<compile_context>
chip_gen: v5e
topology: v5e:2x2
jax: 0.10.0
libtpu: 0.0.40
codegen_flags: <defaults>
</compile_context>

<pallas_src>
import functools
import math

import jax
import jax.numpy as jnp
from jax import lax
from jax.experimental import pallas as pl
from jax.experimental.pallas import tpu as pltpu


# ---------------------------------------------------------------------------
# In-kernel helpers (traced inside Pallas bodies)
# ---------------------------------------------------------------------------
def _layernorm(x, g, b, eps):
    mean = jnp.mean(x, axis=-1, keepdims=True)
    var = jnp.mean((x - mean) ** 2, axis=-1, keepdims=True)
    return (x - mean) * lax.rsqrt(var + eps) * g + b


def _gelu_erf(x):
    # exact (erf) GELU, as in BERT
    return 0.5 * x * (1.0 + lax.erf(x / jnp.sqrt(jnp.float32(2.0))))


# ---------------------------------------------------------------------------
# Pallas kernels
# ---------------------------------------------------------------------------
def _embed_ln_kernel(x_ref, g_ref, b_ref, o_ref, *, eps):
    o_ref[0] = _layernorm(x_ref[0], g_ref[...], b_ref[...], eps)


def _encoder_layer_kernel(x_ref, mask_ref,
                          wqkv_ref, bqkv_ref, wo_ref, bo_ref,
                          ln1_g_ref, ln1_b_ref,
                          w1_ref, b1_ref, w2_ref, b2_ref,
                          ln2_g_ref, ln2_b_ref,
                          o_ref, *, num_heads, head_dim, scale, eps):
    """One full transformer encoder layer for a single batch element."""
    x = x_ref[0]                               # [S, H]
    mask = mask_ref[0]                         # [1, S] additive mask
    H = num_heads * head_dim

    # ---- fused QKV projection: single MXU matmul of lane-width 3H ----------
    qkv = jnp.dot(x, wqkv_ref[...], preferred_element_type=jnp.float32) + bqkv_ref[...]

    # ---- multi-head self attention (heads unrolled; static lane slices) ----
    wo = wo_ref[...]                           # [H, H]
    ctx_proj = jnp.zeros_like(x)               # [S, H] f32 accumulator
    for h in range(num_heads):
        lo = h * head_dim
        q_h = qkv[:, lo:lo + head_dim]                       # [S, Dh]
        k_h = qkv[:, H + lo:H + lo + head_dim]               # [S, Dh]
        v_h = qkv[:, 2 * H + lo:2 * H + lo + head_dim]       # [S, Dh]
        scores = lax.dot_general(
            q_h, k_h, (((1,), (1,)), ((), ())),
            preferred_element_type=jnp.float32) * scale + mask   # [S, S]
        scores = scores - jnp.max(scores, axis=-1, keepdims=True)
        p = jnp.exp(scores)
        p = p * pl.reciprocal(jnp.sum(p, axis=-1, keepdims=True), approx=True)
        ctx_h = jnp.dot(p, v_h, preferred_element_type=jnp.float32)  # [S, Dh]
        # output projection folded per head: concat(ctx) @ wo == sum_h ctx_h @ wo_h
        ctx_proj = ctx_proj + jnp.dot(ctx_h, wo[lo:lo + head_dim, :],
                                      preferred_element_type=jnp.float32)
    attn_out = ctx_proj + bo_ref[...]

    # ---- residual + LayerNorm 1 (fused) -------------------------------------
    h1 = _layernorm(attn_out + x, ln1_g_ref[...], ln1_b_ref[...], eps)

    # ---- FFN (GELU) + FFN2 ---------------------------------------------------
    ffn = _gelu_erf(jnp.dot(h1, w1_ref[...],
                            preferred_element_type=jnp.float32) + b1_ref[...])
    ffn = jnp.dot(ffn, w2_ref[...],
                  preferred_element_type=jnp.float32) + b2_ref[...]

    # ---- residual + LayerNorm 2 (fused) -------------------------------------
    o_ref[0] = _layernorm(ffn + h1, ln2_g_ref[...], ln2_b_ref[...], eps)


def _pooler_cls_kernel(cls_ref, pw_ref, pb_ref, cw_ref, cb_ref, o_ref):
    pooled = jnp.tanh(jnp.dot(cls_ref[...], pw_ref[...],
                              preferred_element_type=jnp.float32) + pb_ref[...])
    o_ref[...] = jnp.dot(pooled, cw_ref[...],
                         preferred_element_type=jnp.float32) + cb_ref[...]


# ---------------------------------------------------------------------------
# pallas_call wrappers
# ---------------------------------------------------------------------------
def pallas_embed_layernorm(x, gamma, beta, eps=1e-12):
    B, S, H = x.shape
    kernel = functools.partial(_embed_ln_kernel, eps=eps)
    return pl.pallas_call(
        kernel,
        out_shape=jax.ShapeDtypeStruct((B, S, H), jnp.float32),
        grid=(B,),
        in_specs=[pl.BlockSpec((1, S, H), lambda b: (b, 0, 0)),
                  pl.BlockSpec((1, H), lambda b: (0, 0)),
                  pl.BlockSpec((1, H), lambda b: (0, 0))],
        out_specs=pl.BlockSpec((1, S, H), lambda b: (b, 0, 0)),
        compiler_params=pltpu.CompilerParams(
            dimension_semantics=("parallel",)),
    )(x, gamma.reshape(1, H), beta.reshape(1, H))


def pallas_encoder_layer(x, mask_add, layer, *, num_heads, head_dim, eps=1e-12):
    B, S, H = x.shape
    I = layer["w1"].shape[1]
    scale = 1.0 / math.sqrt(head_dim)

    # Fuse Q|K|V weights/biases into one [H, 3H] projection (plain-JAX glue).
    wqkv = jnp.concatenate([layer["wq"], layer["wk"], layer["wv"]], axis=1)
    bqkv = jnp.concatenate([layer["bq"], layer["bk"], layer["bv"]]).reshape(1, 3 * H)

    def rep(shape):  # whole-array operand, same block for every grid step
        return pl.BlockSpec(shape, lambda b: (0,) * len(shape))

    kernel = functools.partial(_encoder_layer_kernel, num_heads=num_heads,
                               head_dim=head_dim, scale=scale, eps=eps)
    return pl.pallas_call(
        kernel,
        out_shape=jax.ShapeDtypeStruct((B, S, H), jnp.float32),
        grid=(B,),
        in_specs=[
            pl.BlockSpec((1, S, H), lambda b: (b, 0, 0)),   # x
            pl.BlockSpec((1, 1, S), lambda b: (b, 0, 0)),   # additive mask [B,1,S]
            rep((H, 3 * H)), rep((1, 3 * H)),               # wqkv, bqkv
            rep((H, H)), rep((1, H)),                       # wo, bo
            rep((1, H)), rep((1, H)),                       # ln1 gamma/beta
            rep((H, I)), rep((1, I)),                       # w1, b1
            rep((I, H)), rep((1, H)),                       # w2, b2
            rep((1, H)), rep((1, H)),                       # ln2 gamma/beta
        ],
        out_specs=pl.BlockSpec((1, S, H), lambda b: (b, 0, 0)),
        compiler_params=pltpu.CompilerParams(
            dimension_semantics=("parallel",)),
    )(x, mask_add,
      wqkv, bqkv,
      layer["wo"], layer["bo"].reshape(1, H),
      layer["ln1_g"].reshape(1, H), layer["ln1_b"].reshape(1, H),
      layer["w1"], layer["b1"].reshape(1, I),
      layer["w2"], layer["b2"].reshape(1, H),
      layer["ln2_g"].reshape(1, H), layer["ln2_b"].reshape(1, H))


def pallas_pooler_classifier(cls_tok, pool_w, pool_b, cls_w, cls_b):
    B, H = cls_tok.shape
    L = cls_w.shape[1]
    return pl.pallas_call(
        _pooler_cls_kernel,
        out_shape=jax.ShapeDtypeStruct((B, L), jnp.float32),
        grid=(1,),
        in_specs=[pl.BlockSpec((B, H), lambda i: (0, 0)),
                  pl.BlockSpec((H, H), lambda i: (0, 0)),
                  pl.BlockSpec((1, H), lambda i: (0, 0)),
                  pl.BlockSpec((H, L), lambda i: (0, 0)),
                  pl.BlockSpec((1, L), lambda i: (0, 0))],
        out_specs=pl.BlockSpec((B, L), lambda i: (0, 0)),
    )(cls_tok, pool_w, pool_b.reshape(1, H), cls_w, cls_b.reshape(1, L))


# ---------------------------------------------------------------------------
# Mini-BERT configuration + deterministic parameter init
# ---------------------------------------------------------------------------
VOCAB = 100
MAX_POS = 16
TYPE_VOCAB = 2
HIDDEN = 32
NUM_HEADS = 2
HEAD_DIM = HIDDEN // NUM_HEADS
NUM_LAYERS = 2
INTERMEDIATE = 64
NUM_LABELS = 2


def init_params(key):
    def nrm(k, shape):
        return (0.02 * jax.random.normal(k, shape)).astype(jnp.float32)

    keys = iter(jax.random.split(key, 8 + NUM_LAYERS * 16))
    params = {
        "word_emb": nrm(next(keys), (VOCAB, HIDDEN)),
        "pos_emb": nrm(next(keys), (MAX_POS, HIDDEN)),
        "type_emb": nrm(next(keys), (TYPE_VOCAB, HIDDEN)),
        "emb_ln_g": jnp.ones((HIDDEN,), jnp.float32),
        "emb_ln_b": jnp.zeros((HIDDEN,), jnp.float32),
        "pool_w": nrm(next(keys), (HIDDEN, HIDDEN)),
        "pool_b": jnp.zeros((HIDDEN,), jnp.float32),
        "cls_w": nrm(next(keys), (HIDDEN, NUM_LABELS)),
        "cls_b": jnp.zeros((NUM_LABELS,), jnp.float32),
        "layers": [],
    }
    for _ in range(NUM_LAYERS):
        layer = {
            "wq": nrm(next(keys), (HIDDEN, HIDDEN)),
            "bq": jnp.zeros((HIDDEN,), jnp.float32),
            "wk": nrm(next(keys), (HIDDEN, HIDDEN)),
            "bk": jnp.zeros((HIDDEN,), jnp.float32),
            "wv": nrm(next(keys), (HIDDEN, HIDDEN)),
            "bv": jnp.zeros((HIDDEN,), jnp.float32),
            "wo": nrm(next(keys), (HIDDEN, HIDDEN)),
            "bo": jnp.zeros((HIDDEN,), jnp.float32),
            "ln1_g": jnp.ones((HIDDEN,), jnp.float32),
            "ln1_b": jnp.zeros((HIDDEN,), jnp.float32),
            "w1": nrm(next(keys), (HIDDEN, INTERMEDIATE)),
            "b1": jnp.zeros((INTERMEDIATE,), jnp.float32),
            "w2": nrm(next(keys), (INTERMEDIATE, HIDDEN)),
            "b2": jnp.zeros((HIDDEN,), jnp.float32),
            "ln2_g": jnp.ones((HIDDEN,), jnp.float32),
            "ln2_b": jnp.zeros((HIDDEN,), jnp.float32),
        }
        params["layers"].append(layer)
    return params


# ---------------------------------------------------------------------------
# Forward pass (== CustomBERTClassifier.forward -> logits)
# ---------------------------------------------------------------------------
def bert_classifier_forward(params, input_ids, token_type_ids, attention_mask):
    B, S = input_ids.shape

    # Embeddings: data-dependent gathers left to XLA (plain-JAX glue).
    emb = (params["word_emb"][input_ids]
           + params["pos_emb"][jnp.arange(S)][None, :, :]
           + params["type_emb"][token_type_ids])             # [B, S, H]
    x = pallas_embed_layernorm(emb, params["emb_ln_g"], params["emb_ln_b"])

    # Additive attention mask kept at [B, 1, S]; broadcast across heads in-kernel.
    mask_add = ((1.0 - attention_mask.astype(jnp.float32)) * -1e9).reshape(B, 1, S)

    # One fused Pallas kernel per encoder layer (grid over batch, megacore-parallel).
    for layer in params["layers"]:
        x = pallas_encoder_layer(x, mask_add, layer,
                                 num_heads=NUM_HEADS, head_dim=HEAD_DIM)

    cls_tok = x[:, 0, :]                                      # [B, H]
    logits = pallas_pooler_classifier(cls_tok, params["pool_w"], params["pool_b"],
                                      params["cls_w"], params["cls_b"])
    return logits


# ---------------------------------------------------------------------------
if __name__ == "__main__":
    key = jax.random.PRNGKey(0)
    pkey, ikey = jax.random.split(key)

    params = init_params(pkey)

    B, S = 2, 8
    input_ids = jax.random.randint(ikey, (B, S), 0, VOCAB, dtype=jnp.int32)
    token_type_ids = jnp.zeros((B, S), jnp.int32)
    attention_mask = jnp.ones((B, S), jnp.int32)

    forward = jax.jit(bert_classifier_forward)
    logits = forward(params, input_ids, token_type_ids, attention_mask)
    logits = jax.block_until_ready(logits)
    assert logits.shape == (B, NUM_LABELS)
    assert jnp.all(jnp.isfinite(logits))
    print("KERNEL_OK")
</pallas_src>

<mosaic_0001>
module attributes {stable_mosaic.version = 11 : i64} {
  func.func @_pooler_cls_kernel(%arg0: i32, %arg1: memref<2x32xf32, #tpu.memory_space<vmem>>, %arg2: memref<32x32xf32, #tpu.memory_space<vmem>>, %arg3: memref<1x32xf32, #tpu.memory_space<vmem>>, %arg4: memref<32x2xf32, #tpu.memory_space<vmem>>, %arg5: memref<1x2xf32, #tpu.memory_space<vmem>>, %arg6: memref<2x2xf32, #tpu.memory_space<vmem>>) attributes {dimension_semantics = [#tpu.dimension_semantics<arbitrary>], iteration_bounds = array<i64: 1>, scalar_prefetch = 0 : i64, scratch_operands = 0 : i64, tpu.core_type = #tpu.core_type<tc>, window_params = [{pipeline_mode = #tpu.pipeline_mode<synchronous>, transform_indices = @transform_0, window_bounds = array<i64: 2, 32>}, {pipeline_mode = #tpu.pipeline_mode<synchronous>, transform_indices = @transform_1, window_bounds = array<i64: 32, 32>}, {pipeline_mode = #tpu.pipeline_mode<synchronous>, transform_indices = @transform_2, window_bounds = array<i64: 1, 32>}, {pipeline_mode = #tpu.pipeline_mode<synchronous>, transform_indices = @transform_3, window_bounds = array<i64: 32, 2>}, {pipeline_mode = #tpu.pipeline_mode<synchronous>, transform_indices = @transform_4, window_bounds = array<i64: 1, 2>}, {pipeline_mode = #tpu.pipeline_mode<synchronous>, transform_indices = @transform_5, window_bounds = array<i64: 2, 2>}]} {
    %c0 = arith.constant 0 : index
    %c0_0 = arith.constant 0 : index
    %0 = vector.load %arg1[%c0, %c0_0] : memref<2x32xf32, #tpu.memory_space<vmem>>, vector<2x32xf32>
    %c0_1 = arith.constant 0 : index
    %c0_2 = arith.constant 0 : index
    %1 = vector.load %arg2[%c0_1, %c0_2] : memref<32x32xf32, #tpu.memory_space<vmem>>, vector<32x32xf32>
    %cst = arith.constant dense<0.000000e+00> : vector<2x32xf32>
    %2 = tpu.matmul %0, %1, %cst {dimension_numbers = #tpu.dot_dimension_numbers<[1], [0], [0], [1], [0, 0, 1, 1], [], []>} : vector<2x32xf32>, vector<32x32xf32>, vector<2x32xf32> -> vector<2x32xf32>
    %c0_3 = arith.constant 0 : index
    %c0_4 = arith.constant 0 : index
    %3 = vector.load %arg3[%c0_3, %c0_4] : memref<1x32xf32, #tpu.memory_space<vmem>>, vector<1x32xf32>
    %4 = vector.broadcast %3 : vector<1x32xf32> to vector<2x32xf32>
    %5 = arith.addf %2, %4 : vector<2x32xf32>
    %6 = math.tanh %5 : vector<2x32xf32>
    %c0_5 = arith.constant 0 : index
    %c0_6 = arith.constant 0 : index
    %7 = vector.load %arg4[%c0_5, %c0_6] : memref<32x2xf32, #tpu.memory_space<vmem>>, vector<32x2xf32>
    %cst_7 = arith.constant dense<0.000000e+00> : vector<2x2xf32>
    %8 = tpu.matmul %6, %7, %cst_7 {dimension_numbers = #tpu.dot_dimension_numbers<[1], [0], [0], [1], [0, 0, 1, 1], [], []>} : vector<2x32xf32>, vector<32x2xf32>, vector<2x2xf32> -> vector<2x2xf32>
    %c0_8 = arith.constant 0 : index
    %c0_9 = arith.constant 0 : index
    %9 = vector.load %arg5[%c0_8, %c0_9] : memref<1x2xf32, #tpu.memory_space<vmem>>, vector<1x2xf32>
    %10 = vector.broadcast %9 : vector<1x2xf32> to vector<2x2xf32>
    %11 = arith.addf %8, %10 : vector<2x2xf32>
    %c0_10 = arith.constant 0 : index
    %c0_11 = arith.constant 0 : index
    %12 = vector.load %arg6[%c0_10, %c0_11] : memref<2x2xf32, #tpu.memory_space<vmem>>, vector<2x2xf32>
    tpu.vector_store %arg6[%c0_10, %c0_11], %11 {strides = array<i32>} : memref<2x2xf32, #tpu.memory_space<vmem>>, vector<2x2xf32>,
    return
  }
  func.func @transform_0(%arg0: i32) -> (i32, i32) {
    %c0_i32 = arith.constant 0 : i32
    %c0_i32_0 = arith.constant 0 : i32
    %c0_i32_1 = arith.constant 0 : i32
    return %c0_i32, %c0_i32_0 : i32, i32
  }
  func.func @transform_1(%arg0: i32) -> (i32, i32) {
    %c0_i32 = arith.constant 0 : i32
    %c0_i32_0 = arith.constant 0 : i32
    %c0_i32_1 = arith.constant 0 : i32
    return %c0_i32, %c0_i32_0 : i32, i32
  }
  func.func @transform_2(%arg0: i32) -> (i32, i32) {
    %c0_i32 = arith.constant 0 : i32
    %c0_i32_0 = arith.constant 0 : i32
    %c0_i32_1 = arith.constant 0 : i32
    return %c0_i32, %c0_i32_0 : i32, i32
  }
  func.func @transform_3(%arg0: i32) -> (i32, i32) {
    %c0_i32 = arith.constant 0 : i32
    %c0_i32_0 = arith.constant 0 : i32
    %c0_i32_1 = arith.constant 0 : i32
    return %c0_i32, %c0_i32_0 : i32, i32
  }
  func.func @transform_4(%arg0: i32) -> (i32, i32) {
    %c0_i32 = arith.constant 0 : i32
    %c0_i32_0 = arith.constant 0 : i32
    %c0_i32_1 = arith.constant 0 : i32
    return %c0_i32, %c0_i32_0 : i32, i32
  }
  func.func @transform_5(%arg0: i32) -> (i32, i32) {
    %c0_i32 = arith.constant 0 : i32
    %c0_i32_0 = arith.constant 0 : i32
    %c0_i32_1 = arith.constant 0 : i32
    return %c0_i32, %c0_i32_0 : i32, i32
  }
}

module attributes {stable_mosaic.version = 11 : i64} {
  func.func @_embed_ln_kernel(%arg0: i32, %arg1: memref<1x8x32xf32, #tpu.memory_space<vmem>>, %arg2: memref<1x32xf32, #tpu.memory_space<vmem>>, %arg3: memref<1x32xf32, #tpu.memory_space<vmem>>, %arg4: memref<1x8x32xf32, #tpu.memory_space<vmem>>) attributes {dimension_semantics = [#tpu.dimension_semantics<parallel>], iteration_bounds = array<i64: 2>, scalar_prefetch = 0 : i64, scratch_operands = 0 : i64, tpu.core_type = #tpu.core_type<tc>, window_params = [{transform_indices = @transform_0, window_bounds = array<i64: 1, 8, 32>}, {pipeline_mode = #tpu.pipeline_mode<synchronous>, transform_indices = @transform_1, window_bounds = array<i64: 1, 32>}, {pipeline_mode = #tpu.pipeline_mode<synchronous>, transform_indices = @transform_2, window_bounds = array<i64: 1, 32>}, {transform_indices = @transform_3, window_bounds = array<i64: 1, 8, 32>}]} {
    %c0 = arith.constant 0 : index
    %c0_0 = arith.constant 0 : index
    %c0_1 = arith.constant 0 : index
    %0 = vector.load %arg1[%c0, %c0_0, %c0_1] : memref<1x8x32xf32, #tpu.memory_space<vmem>>, vector<1x8x32xf32>
    %1 = vector.shape_cast %0 : vector<1x8x32xf32> to vector<8x32xf32>
    %c0_2 = arith.constant 0 : index
    %c0_3 = arith.constant 0 : index
    %2 = vector.load %arg2[%c0_2, %c0_3] : memref<1x32xf32, #tpu.memory_space<vmem>>, vector<1x32xf32>
    %c0_4 = arith.constant 0 : index
    %c0_5 = arith.constant 0 : index
    %3 = vector.load %arg3[%c0_4, %c0_5] : memref<1x32xf32, #tpu.memory_space<vmem>>, vector<1x32xf32>
    %cst = arith.constant dense<0.000000e+00> : vector<8xf32>
    %4 = vector.multi_reduction <add>, %1, %cst [1] : vector<8x32xf32> to vector<8xf32>
    %5 = vector.shape_cast %4 : vector<8xf32> to vector<8x1xf32>
    %cst_6 = arith.constant 3.200000e+01 : f32
    %6 = vector.broadcast %cst_6 : f32 to vector<8x1xf32>
    %7 = arith.divf %5, %6 : vector<8x1xf32>
    %8 = vector.broadcast %7 : vector<8x1xf32> to vector<8x32xf32>
    %9 = arith.subf %1, %8 : vector<8x32xf32>
    %10 = arith.mulf %9, %9 : vector<8x32xf32>
    %cst_7 = arith.constant dense<0.000000e+00> : vector<8xf32>
    %11 = vector.multi_reduction <add>, %10, %cst_7 [1] : vector<8x32xf32> to vector<8xf32>
    %12 = vector.shape_cast %11 : vector<8xf32> to vector<8x1xf32>
    %cst_8 = arith.constant 3.200000e+01 : f32
    %13 = vector.broadcast %cst_8 : f32 to vector<8x1xf32>
    %14 = arith.divf %12, %13 : vector<8x1xf32>
    %15 = vector.broadcast %7 : vector<8x1xf32> to vector<8x32xf32>
    %16 = arith.subf %1, %15 : vector<8x32xf32>
    %cst_9 = arith.constant 9.99999996E-13 : f32
    %17 = vector.broadcast %cst_9 : f32 to vector<8x1xf32>
    %18 = arith.addf %14, %17 : vector<8x1xf32>
    %19 = math.rsqrt %18 : vector<8x1xf32>
    %20 = vector.broadcast %19 : vector<8x1xf32> to vector<8x32xf32>
    %21 = arith.mulf %16, %20 : vector<8x32xf32>
    %22 = vector.broadcast %2 : vector<1x32xf32> to vector<8x32xf32>
    %23 = arith.mulf %21, %22 : vector<8x32xf32>
    %24 = vector.broadcast %3 : vector<1x32xf32> to vector<8x32xf32>
    %25 = arith.addf %23, %24 : vector<8x32xf32>
    %c0_10 = arith.constant 0 : index
    %c0_11 = arith.constant 0 : index
    %c0_12 = arith.constant 0 : index
    %26 = vector.load %arg4[%c0_10, %c0_11, %c0_12] : memref<1x8x32xf32, #tpu.memory_space<vmem>>, vector<1x8x32xf32>
    %27 = vector.shape_cast %26 : vector<1x8x32xf32> to vector<8x32xf32>
    %28 = vector.shape_cast %25 : vector<8x32xf32> to vector<1x8x32xf32>
    tpu.vector_store %arg4[%c0_10, %c0_11, %c0_12], %28 {strides = array<i32>} : memref<1x8x32xf32, #tpu.memory_space<vmem>>, vector<1x8x32xf32>,
    return
  }
  func.func @transform_0(%arg0: i32) -> (i32, i32, i32) {
    %c0_i32 = arith.constant 0 : i32
    %c0_i32_0 = arith.constant 0 : i32
    %c0_i32_1 = arith.constant 0 : i32
    return %arg0, %c0_i32, %c0_i32_0 : i32, i32, i32
  }
  func.func @transform_1(%arg0: i32) -> (i32, i32) {
    %c0_i32 = arith.constant 0 : i32
    %c0_i32_0 = arith.constant 0 : i32
    %c0_i32_1 = arith.constant 0 : i32
    return %c0_i32, %c0_i32_0 : i32, i32
  }
  func.func @transform_2(%arg0: i32) -> (i32, i32) {
    %c0_i32 = arith.constant 0 : i32
    %c0_i32_0 = arith.constant 0 : i32
    %c0_i32_1 = arith.constant 0 : i32
    return %c0_i32, %c0_i32_0 : i32, i32
  }
  func.func @transform_3(%arg0: i32) -> (i32, i32, i32) {
    %c0_i32 = arith.constant 0 : i32
    %c0_i32_0 = arith.constant 0 : i32
    %c0_i32_1 = arith.constant 0 : i32
    return %arg0, %c0_i32, %c0_i32_0 : i32, i32, i32
  }
}

module attributes {stable_mosaic.version = 11 : i64} {
  func.func @_encoder_layer_kernel(%arg0: i32, %arg1: memref<1x8x32xf32, #tpu.memory_space<vmem>>, %arg2: memref<1x1x8xf32, #tpu.memory_space<vmem>>, %arg3: memref<32x96xf32, #tpu.memory_space<vmem>>, %arg4: memref<1x96xf32, #tpu.memory_space<vmem>>, %arg5: memref<32x32xf32, #tpu.memory_space<vmem>>, %arg6: memref<1x32xf32, #tpu.memory_space<vmem>>, %arg7: memref<1x32xf32, #tpu.memory_space<vmem>>, %arg8: memref<1x32xf32, #tpu.memory_space<vmem>>, %arg9: memref<32x64xf32, #tpu.memory_space<vmem>>, %arg10: memref<1x64xf32, #tpu.memory_space<vmem>>, %arg11: memref<64x32xf32, #tpu.memory_space<vmem>>, %arg12: memref<1x32xf32, #tpu.memory_space<vmem>>, %arg13: memref<1x32xf32, #tpu.memory_space<vmem>>, %arg14: memref<1x32xf32, #tpu.memory_space<vmem>>, %arg15: memref<1x8x32xf32, #tpu.memory_space<vmem>>) attributes {dimension_semantics = [#tpu.dimension_semantics<parallel>], iteration_bounds = array<i64: 2>, scalar_prefetch = 0 : i64, scratch_operands = 0 : i64, tpu.core_type = #tpu.core_type<tc>, window_params = [{transform_indices = @transform_0, window_bounds = array<i64: 1, 8, 32>}, {transform_indices = @transform_1, window_bounds = array<i64: 1, 1, 8>}, {pipeline_mode = #tpu.pipeline_mode<synchronous>, transform_indices = @transform_2, window_bounds = array<i64: 32, 96>}, {pipeline_mode = #tpu.pipeline_mode<synchronous>, transform_indices = @transform_3, window_bounds = array<i64: 1, 96>}, {pipeline_mode = #tpu.pipeline_mode<synchronous>, transform_indices = @transform_4, window_bounds = array<i64: 32, 32>}, {pipeline_mode = #tpu.pipeline_mode<synchronous>, transform_indices = @transform_5, window_bounds = array<i64: 1, 32>}, {pipeline_mode = #tpu.pipeline_mode<synchronous>, transform_indices = @transform_6, window_bounds = array<i64: 1, 32>}, {pipeline_mode = #tpu.pipeline_mode<synchronous>, transform_indices = @transform_7, window_bounds = array<i64: 1, 32>}, {pipeline_mode = #tpu.pipeline_mode<synchronous>, transform_indices = @transform_8, window_bounds = array<i64: 32, 64>}, {pipeline_mode = #tpu.pipeline_mode<synchronous>, transform_indices = @transform_9, window_bounds = array<i64: 1, 64>}, {pipeline_mode = #tpu.pipeline_mode<synchronous>, transform_indices = @transform_10, window_bounds = array<i64: 64, 32>}, {pipeline_mode = #tpu.pipeline_mode<synchronous>, transform_indices = @transform_11, window_bounds = array<i64: 1, 32>}, {pipeline_mode = #tpu.pipeline_mode<synchronous>, transform_indices = @transform_12, window_bounds = array<i64: 1, 32>}, {pipeline_mode = #tpu.pipeline_mode<synchronous>, transform_indices = @transform_13, window_bounds = array<i64: 1, 32>}, {transform_indices = @transform_14, window_bounds = array<i64: 1, 8, 32>}]} {
    %c0 = arith.constant 0 : index
    %c0_0 = arith.constant 0 : index
    %c0_1 = arith.constant 0 : index
    %0 = vector.load %arg1[%c0, %c0_0, %c0_1] : memref<1x8x32xf32, #tpu.memory_space<vmem>>, vector<1x8x32xf32>
    %1 = vector.shape_cast %0 : vector<1x8x32xf32> to vector<8x32xf32>
    %c0_2 = arith.constant 0 : index
    %c0_3 = arith.constant 0 : index
    %c0_4 = arith.constant 0 : index
    %2 = vector.load %arg2[%c0_2, %c0_3, %c0_4] : memref<1x1x8xf32, #tpu.memory_space<vmem>>, vector<1x1x8xf32>
    %3 = vector.shape_cast %2 : vector<1x1x8xf32> to vector<1x8xf32>
    %c0_5 = arith.constant 0 : index
    %c0_6 = arith.constant 0 : index
    %4 = vector.load %arg3[%c0_5, %c0_6] : memref<32x96xf32, #tpu.memory_space<vmem>>, vector<32x96xf32>
    %cst = arith.constant dense<0.000000e+00> : vector<8x96xf32>
    %5 = tpu.matmul %1, %4, %cst {dimension_numbers = #tpu.dot_dimension_numbers<[1], [0], [0], [1], [0, 0, 1, 1], [], []>} : vector<8x32xf32>, vector<32x96xf32>, vector<8x96xf32> -> vector<8x96xf32>
    %c0_7 = arith.constant 0 : index
    %c0_8 = arith.constant 0 : index
    %6 = vector.load %arg4[%c0_7, %c0_8] : memref<1x96xf32, #tpu.memory_space<vmem>>, vector<1x96xf32>
    %7 = vector.broadcast %6 : vector<1x96xf32> to vector<8x96xf32>
    %8 = arith.addf %5, %7 : vector<8x96xf32>
    %c0_9 = arith.constant 0 : index
    %c0_10 = arith.constant 0 : index
    %9 = vector.load %arg5[%c0_9, %c0_10] : memref<32x32xf32, #tpu.memory_space<vmem>>, vector<32x32xf32>
    %cst_11 = arith.constant 0.000000e+00 : f32
    %10 = vector.broadcast %cst_11 : f32 to vector<8x32xf32>
    %11 = vector.extract_strided_slice %8 {offsets = [0, 0], sizes = [8, 16], strides = [1, 1]} : vector<8x96xf32> to vector<8x16xf32>
    %12 = vector.extract_strided_slice %8 {offsets = [0, 32], sizes = [8, 16], strides = [1, 1]} : vector<8x96xf32> to vector<8x16xf32>
    %13 = vector.extract_strided_slice %8 {offsets = [0, 64], sizes = [8, 16], strides = [1, 1]} : vector<8x96xf32> to vector<8x16xf32>
    %cst_12 = arith.constant dense<0.000000e+00> : vector<8x8xf32>
    %14 = tpu.matmul %11, %12, %cst_12 {dimension_numbers = #tpu.dot_dimension_numbers<[1], [1], [0], [0], [0, 0, 1, 0], [], []>} : vector<8x16xf32>, vector<8x16xf32>, vector<8x8xf32> -> vector<8x8xf32>
    %cst_13 = arith.constant 2.500000e-01 : f32
    %15 = vector.broadcast %cst_13 : f32 to vector<8x8xf32>
    %16 = arith.mulf %14, %15 : vector<8x8xf32>
    %17 = vector.broadcast %3 : vector<1x8xf32> to vector<8x8xf32>
    %18 = arith.addf %16, %17 : vector<8x8xf32>
    %cst_14 = arith.constant dense<0xFF800000> : vector<8xf32>
    %19 = vector.multi_reduction <maximumf>, %18, %cst_14 [1] : vector<8x8xf32> to vector<8xf32>
    %20 = vector.shape_cast %19 : vector<8xf32> to vector<8x1xf32>
    %21 = vector.broadcast %20 : vector<8x1xf32> to vector<8x8xf32>
    %22 = arith.subf %18, %21 : vector<8x8xf32>
    %23 = math.exp %22 : vector<8x8xf32>
    %cst_15 = arith.constant dense<0.000000e+00> : vector<8xf32>
    %24 = vector.multi_reduction <add>, %23, %cst_15 [1] : vector<8x8xf32> to vector<8xf32>
    %25 = vector.shape_cast %24 : vector<8xf32> to vector<8x1xf32>
    %26 = tpu.reciprocal %25 {approx = true} : vector<8x1xf32> -> vector<8x1xf32>
    %27 = vector.broadcast %26 : vector<8x1xf32> to vector<8x8xf32>
    %28 = arith.mulf %23, %27 : vector<8x8xf32>
    %cst_16 = arith.constant dense<0.000000e+00> : vector<8x16xf32>
    %29 = tpu.matmul %28, %13, %cst_16 {dimension_numbers = #tpu.dot_dimension_numbers<[1], [0], [0], [1], [0, 0, 1, 1], [], []>} : vector<8x8xf32>, vector<8x16xf32>, vector<8x16xf32> -> vector<8x16xf32>
    %30 = vector.extract_strided_slice %9 {offsets = [0, 0], sizes = [16, 32], strides = [1, 1]} : vector<32x32xf32> to vector<16x32xf32>
    %cst_17 = arith.constant dense<0.000000e+00> : vector<8x32xf32>
    %31 = tpu.matmul %29, %30, %cst_17 {dimension_numbers = #tpu.dot_dimension_numbers<[1], [0], [0], [1], [0, 0, 1, 1], [], []>} : vector<8x16xf32>, vector<16x32xf32>, vector<8x32xf32> -> vector<8x32xf32>
    %32 = arith.addf %10, %31 : vector<8x32xf32>
    %33 = vector.extract_strided_slice %8 {offsets = [0, 16], sizes = [8, 16], strides = [1, 1]} : vector<8x96xf32> to vector<8x16xf32>
    %34 = vector.extract_strided_slice %8 {offsets = [0, 48], sizes = [8, 16], strides = [1, 1]} : vector<8x96xf32> to vector<8x16xf32>
    %35 = vector.extract_strided_slice %8 {offsets = [0, 80], sizes = [8, 16], strides = [1, 1]} : vector<8x96xf32> to vector<8x16xf32>
    %cst_18 = arith.constant dense<0.000000e+00> : vector<8x8xf32>
    %36 = tpu.matmul %33, %34, %cst_18 {dimension_numbers = #tpu.dot_dimension_numbers<[1], [1], [0], [0], [0, 0, 1, 0], [], []>} : vector<8x16xf32>, vector<8x16xf32>, vector<8x8xf32> -> vector<8x8xf32>
    %cst_19 = arith.constant 2.500000e-01 : f32
    %37 = vector.broadcast %cst_19 : f32 to vector<8x8xf32>
    %38 = arith.mulf %36, %37 : vector<8x8xf32>
    %39 = vector.broadcast %3 : vector<1x8xf32> to vector<8x8xf32>
    %40 = arith.addf %38, %39 : vector<8x8xf32>
    %cst_20 = arith.constant dense<0xFF800000> : vector<8xf32>
    %41 = vector.multi_reduction <maximumf>, %40, %cst_20 [1] : vector<8x8xf32> to vector<8xf32>
    %42 = vector.shape_cast %41 : vector<8xf32> to vector<8x1xf32>
    %43 = vector.broadcast %42 : vector<8x1xf32> to vector<8x8xf32>
    %44 = arith.subf %40, %43 : vector<8x8xf32>
    %45 = math.exp %44 : vector<8x8xf32>
    %cst_21 = arith.constant dense<0.000000e+00> : vector<8xf32>
    %46 = vector.multi_reduction <add>, %45, %cst_21 [1] : vector<8x8xf32> to vector<8xf32>
    %47 = vector.shape_cast %46 : vector<8xf32> to vector<8x1xf32>
    %48 = tpu.reciprocal %47 {approx = true} : vector<8x1xf32> -> vector<8x1xf32>
    %49 = vector.broadcast %48 : vector<8x1xf32> to vector<8x8xf32>
    %50 = arith.mulf %45, %49 : vector<8x8xf32>
    %cst_22 = arith.constant dense<0.000000e+00> : vector<8x16xf32>
    %51 = tpu.matmul %50, %35, %cst_22 {dimension_numbers = #tpu.dot_dimension_numbers<[1], [0], [0], [1], [0, 0, 1, 1], [], []>} : vector<8x8xf32>, vector<8x16xf32>, vector<8x16xf32> -> vector<8x16xf32>
    %52 = vector.extract_strided_slice %9 {offsets = [16, 0], sizes = [16, 32], strides = [1, 1]} : vector<32x32xf32> to vector<16x32xf32>
    %cst_23 = arith.constant dense<0.000000e+00> : vector<8x32xf32>
    %53 = tpu.matmul %51, %52, %cst_23 {dimension_numbers = #tpu.dot_dimension_numbers<[1], [0], [0], [1], [0, 0, 1, 1], [], []>} : vector<8x16xf32>, vector<16x32xf32>, vector<8x32xf32> -> vector<8x32xf32>
    %54 = arith.addf %32, %53 : vector<8x32xf32>
    %c0_24 = arith.constant 0 : index
    %c0_25 = arith.constant 0 : index
    %55 = vector.load %arg6[%c0_24, %c0_25] : memref<1x32xf32, #tpu.memory_space<vmem>>, vector<1x32xf32>
    %56 = vector.broadcast %55 : vector<1x32xf32> to vector<8x32xf32>
    %57 = arith.addf %54, %56 : vector<8x32xf32>
    %58 = arith.addf %57, %1 : vector<8x32xf32>
    %c0_26 = arith.constant 0 : index
    %c0_27 = arith.constant 0 : index
    %59 = vector.load %arg7[%c0_26, %c0_27] : memref<1x32xf32, #tpu.memory_space<vmem>>, vector<1x32xf32>
    %c0_28 = arith.constant 0 : index
    %c0_29 = arith.constant 0 : index
    %60 = vector.load %arg8[%c0_28, %c0_29] : memref<1x32xf32, #tpu.memory_space<vmem>>, vector<1x32xf32>
    %cst_30 = arith.constant dense<0.000000e+00> : vector<8xf32>
    %61 = vector.multi_reduction <add>, %58, %cst_30 [1] : vector<8x32xf32> to vector<8xf32>
    %62 = vector.shape_cast %61 : vector<8xf32> to vector<8x1xf32>
    %cst_31 = arith.constant 3.200000e+01 : f32
    %63 = vector.broadcast %cst_31 : f32 to vector<8x1xf32>
    %64 = arith.divf %62, %63 : vector<8x1xf32>
    %65 = vector.broadcast %64 : vector<8x1xf32> to vector<8x32xf32>
    %66 = arith.subf %58, %65 : vector<8x32xf32>
    %67 = arith.mulf %66, %66 : vector<8x32xf32>
    %cst_32 = arith.constant dense<0.000000e+00> : vector<8xf32>
    %68 = vector.multi_reduction <add>, %67, %cst_32 [1] : vector<8x32xf32> to vector<8xf32>
    %69 = vector.shape_cast %68 : vector<8xf32> to vector<8x1xf32>
    %cst_33 = arith.constant 3.200000e+01 : f32
    %70 = vector.broadcast %cst_33 : f32 to vector<8x1xf32>
    %71 = arith.divf %69, %70 : vector<8x1xf32>
    %72 = vector.broadcast %64 : vector<8x1xf32> to vector<8x32xf32>
    %73 = arith.subf %58, %72 : vector<8x32xf32>
    %cst_34 = arith.constant 9.99999996E-13 : f32
    %74 = vector.broadcast %cst_34 : f32 to vector<8x1xf32>
    %75 = arith.addf %71, %74 : vector<8x1xf32>
    %76 = math.rsqrt %75 : vector<8x1xf32>
    %77 = vector.broadcast %76 : vector<8x1xf32> to vector<8x32xf32>
    %78 = arith.mulf %73, %77 : vector<8x32xf32>
    %79 = vector.broadcast %59 : vector<1x32xf32> to vector<8x32xf32>
    %80 = arith.mulf %78, %79 : vector<8x32xf32>
    %81 = vector.broadcast %60 : vector<1x32xf32> to vector<8x32xf32>
    %82 = arith.addf %80, %81 : vector<8x32xf32>
    %c0_35 = arith.constant 0 : index
    %c0_36 = arith.constant 0 : index
    %83 = vector.load %arg9[%c0_35, %c0_36] : memref<32x64xf32, #tpu.memory_space<vmem>>, vector<32x64xf32>
    %cst_37 = arith.constant dense<0.000000e+00> : vector<8x64xf32>
    %84 = tpu.matmul %82, %83, %cst_37 {dimension_numbers = #tpu.dot_dimension_numbers<[1], [0], [0], [1], [0, 0, 1, 1], [], []>} : vector<8x32xf32>, vector<32x64xf32>, vector<8x64xf32> -> vector<8x64xf32>
    %c0_38 = arith.constant 0 : index
    %c0_39 = arith.constant 0 : index
    %85 = vector.load %arg10[%c0_38, %c0_39] : memref<1x64xf32, #tpu.memory_space<vmem>>, vector<1x64xf32>
    %86 = vector.broadcast %85 : vector<1x64xf32> to vector<8x64xf32>
    %87 = arith.addf %84, %86 : vector<8x64xf32>
    %cst_40 = arith.constant 5.000000e-01 : f32
    %88 = vector.broadcast %cst_40 : f32 to vector<8x64xf32>
    %89 = arith.mulf %88, %87 : vector<8x64xf32>
    %cst_41 = arith.constant 2.000000e+00 : f32
    %90 = math.sqrt %cst_41 : f32
    %91 = vector.broadcast %90 : f32 to vector<8x64xf32>
    %92 = arith.divf %87, %91 : vector<8x64xf32>
    %93 = math.erf %92 : vector<8x64xf32>
    %cst_42 = arith.constant 1.000000e+00 : f32
    %94 = vector.broadcast %cst_42 : f32 to vector<8x64xf32>
    %95 = arith.addf %94, %93 : vector<8x64xf32>
    %96 = arith.mulf %89, %95 : vector<8x64xf32>
    %c0_43 = arith.constant 0 : index
    %c0_44 = arith.constant 0 : index
    %97 = vector.load %arg11[%c0_43, %c0_44] : memref<64x32xf32, #tpu.memory_space<vmem>>, vector<64x32xf32>
    %cst_45 = arith.constant dense<0.000000e+00> : vector<8x32xf32>
    %98 = tpu.matmul %96, %97, %cst_45 {dimension_numbers = #tpu.dot_dimension_numbers<[1], [0], [0], [1], [0, 0, 1, 1], [], []>} : vector<8x64xf32>, vector<64x32xf32>, vector<8x32xf32> -> vector<8x32xf32>
    %c0_46 = arith.constant 0 : index
    %c0_47 = arith.constant 0 : index
    %99 = vector.load %arg12[%c0_46, %c0_47] : memref<1x32xf32, #tpu.memory_space<vmem>>, vector<1x32xf32>
    %100 = vector.broadcast %99 : vector<1x32xf32> to vector<8x32xf32>
    %101 = arith.addf %98, %100 : vector<8x32xf32>
    %102 = arith.addf %101, %82 : vector<8x32xf32>
    %c0_48 = arith.constant 0 : index
    %c0_49 = arith.constant 0 : index
    %103 = vector.load %arg13[%c0_48, %c0_49] : memref<1x32xf32, #tpu.memory_space<vmem>>, vector<1x32xf32>
    %c0_50 = arith.constant 0 : index
    %c0_51 = arith.constant 0 : index
    %104 = vector.load %arg14[%c0_50, %c0_51] : memref<1x32xf32, #tpu.memory_space<vmem>>, vector<1x32xf32>
    %cst_52 = arith.constant dense<0.000000e+00> : vector<8xf32>
    %105 = vector.multi_reduction <add>, %102, %cst_52 [1] : vector<8x32xf32> to vector<8xf32>
    %106 = vector.shape_cast %105 : vector<8xf32> to vector<8x1xf32>
    %cst_53 = arith.constant 3.200000e+01 : f32
    %107 = vector.broadcast %cst_53 : f32 to vector<8x1xf32>
    %108 = arith.divf %106, %107 : vector<8x1xf32>
    %109 = vector.broadcast %108 : vector<8x1xf32> to vector<8x32xf32>
    %110 = arith.subf %102, %109 : vector<8x32xf32>
    %111 = arith.mulf %110, %110 : vector<8x32xf32>
    %cst_54 = arith.constant dense<0.000000e+00> : vector<8xf32>
    %112 = vector.multi_reduction <add>, %111, %cst_54 [1] : vector<8x32xf32> to vector<8xf32>
    %113 = vector.shape_cast %112 : vector<8xf32> to vector<8x1xf32>
    %cst_55 = arith.constant 3.200000e+01 : f32
    %114 = vector.broadcast %cst_55 : f32 to vector<8x1xf32>
    %115 = arith.divf %113, %114 : vector<8x1xf32>
    %116 = vector.broadcast %108 : vector<8x1xf32> to vector<8x32xf32>
    %117 = arith.subf %102, %116 : vector<8x32xf32>
    %cst_56 = arith.constant 9.99999996E-13 : f32
    %118 = vector.broadcast %cst_56 : f32 to vector<8x1xf32>
    %119 = arith.addf %115, %118 : vector<8x1xf32>
    %120 = math.rsqrt %119 : vector<8x1xf32>
    %121 = vector.broadcast %120 : vector<8x1xf32> to vector<8x32xf32>
    %122 = arith.mulf %117, %121 : vector<8x32xf32>
    %123 = vector.broadcast %103 : vector<1x32xf32> to vector<8x32xf32>
    %124 = arith.mulf %122, %123 : vector<8x32xf32>
    %125 = vector.broadcast %104 : vector<1x32xf32> to vector<8x32xf32>
    %126 = arith.addf %124, %125 : vector<8x32xf32>
    %c0_57 = arith.constant 0 : index
    %c0_58 = arith.constant 0 : index
    %c0_59 = arith.constant 0 : index
    %127 = vector.load %arg15[%c0_57, %c0_58, %c0_59] : memref<1x8x32xf32, #tpu.memory_space<vmem>>, vector<1x8x32xf32>
    %128 = vector.shape_cast %127 : vector<1x8x32xf32> to vector<8x32xf32>
    %129 = vector.shape_cast %126 : vector<8x32xf32> to vector<1x8x32xf32>
    tpu.vector_store %arg15[%c0_57, %c0_58, %c0_59], %129 {strides = array<i32>} : memref<1x8x32xf32, #tpu.memory_space<vmem>>, vector<1x8x32xf32>,
    return
  }
  func.func @transform_0(%arg0: i32) -> (i32, i32, i32) {
    %c0_i32 = arith.constant 0 : i32
    %c0_i32_0 = arith.constant 0 : i32
    %c0_i32_1 = arith.constant 0 : i32
    return %arg0, %c0_i32, %c0_i32_0 : i32, i32, i32
  }
  func.func @transform_1(%arg0: i32) -> (i32, i32, i32) {
    %c0_i32 = arith.constant 0 : i32
    %c0_i32_0 = arith.constant 0 : i32
    %c0_i32_1 = arith.constant 0 : i32
    return %arg0, %c0_i32, %c0_i32_0 : i32, i32, i32
  }
  func.func @transform_2(%arg0: i32) -> (i32, i32) {
    %c0_i32 = arith.constant 0 : i32
    %c0_i32_0 = arith.constant 0 : i32
    %c0_i32_1 = arith.constant 0 : i32
    return %c0_i32, %c0_i32_0 : i32, i32
  }
  func.func @transform_3(%arg0: i32) -> (i32, i32) {
    %c0_i32 = arith.constant 0 : i32
    %c0_i32_0 = arith.constant 0 : i32
    %c0_i32_1 = arith.constant 0 : i32
    return %c0_i32, %c0_i32_0 : i32, i32
  }
  func.func @transform_4(%arg0: i32) -> (i32, i32) {
    %c0_i32 = arith.constant 0 : i32
    %c0_i32_0 = arith.constant 0 : i32
    %c0_i32_1 = arith.constant 0 : i32
    return %c0_i32, %c0_i32_0 : i32, i32
  }
  func.func @transform_5(%arg0: i32) -> (i32, i32) {
    %c0_i32 = arith.constant 0 : i32
    %c0_i32_0 = arith.constant 0 : i32
    %c0_i32_1 = arith.constant 0 : i32
    return %c0_i32, %c0_i32_0 : i32, i32
  }
  func.func @transform_6(%arg0: i32) -> (i32, i32) {
    %c0_i32 = arith.constant 0 : i32
    %c0_i32_0 = arith.constant 0 : i32
    %c0_i32_1 = arith.constant 0 : i32
    return %c0_i32, %c0_i32_0 : i32, i32
  }
  func.func @transform_7(%arg0: i32) -> (i32, i32) {
    %c0_i32 = arith.constant 0 : i32
    %c0_i32_0 = arith.constant 0 : i32
    %c0_i32_1 = arith.constant 0 : i32
    return %c0_i32, %c0_i32_0 : i32, i32
  }
  func.func @transform_8(%arg0: i32) -> (i32, i32) {
    %c0_i32 = arith.constant 0 : i32
    %c0_i32_0 = arith.constant 0 : i32
    %c0_i32_1 = arith.constant 0 : i32
    return %c0_i32, %c0_i32_0 : i32, i32
  }
  func.func @transform_9(%arg0: i32) -> (i32, i32) {
    %c0_i32 = arith.constant 0 : i32
    %c0_i32_0 = arith.constant 0 : i32
    %c0_i32_1 = arith.constant 0 : i32
    return %c0_i32, %c0_i32_0 : i32, i32
  }
  func.func @transform_10(%arg0: i32) -> (i32, i32) {
    %c0_i32 = arith.constant 0 : i32
    %c0_i32_0 = arith.constant 0 : i32
    %c0_i32_1 = arith.constant 0 : i32
    return %c0_i32, %c0_i32_0 : i32, i32
  }
  func.func @transform_11(%arg0: i32) -> (i32, i32) {
    %c0_i32 = arith.constant 0 : i32
    %c0_i32_0 = arith.constant 0 : i32
    %c0_i32_1 = arith.constant 0 : i32
    return %c0_i32, %c0_i32_0 : i32, i32
  }
  func.func @transform_12(%arg0: i32) -> (i32, i32) {
    %c0_i32 = arith.constant 0 : i32
    %c0_i32_0 = arith.constant 0 : i32
    %c0_i32_1 = arith.constant 0 : i32
    return %c0_i32, %c0_i32_0 : i32, i32
  }
  func.func @transform_13(%arg0: i32) -> (i32, i32) {
    %c0_i32 = arith.constant 0 : i32
    %c0_i32_0 = arith.constant 0 : i32
    %c0_i32_1 = arith.constant 0 : i32
    return %c0_i32, %c0_i32_0 : i32, i32
  }
  func.func @transform_14(%arg0: i32) -> (i32, i32, i32) {
    %c0_i32 = arith.constant 0 : i32
    %c0_i32_0 = arith.constant 0 : i32
    %c0_i32_1 = arith.constant 0 : i32
    return %arg0, %c0_i32, %c0_i32_0 : i32, i32, i32
  }
}

</mosaic_0001>

<llo_original>
// kernel: bert_classifier_forward.7
$region0: #{bert_classifier_forward.7}
  #allocation0 [shape = 'u32[]', space=smem, size = 0x4, offset = 0x4, fixed_abs, tag = 'smem constant byte address 0x4 - core index']
  #allocation1 [shape = 'u32[72,128]{1,0:T(1,128)}', space=vmem, size = 0x9000, scoped, tag = 'internal scratch']
  %s0 = inlined_call_operand.vmem [shape: f32[2,32], index: 0, kind: input, shape index: {}]
  %s1 = inlined_call_operand.vmem [shape: f32[32,32], index: 1, kind: input, shape index: {}]
  %s2 = inlined_call_operand.vmem [shape: f32[1,32], index: 2, kind: input, shape index: {}]
  %s3 = inlined_call_operand.vmem [shape: f32[32,2], index: 3, kind: input, shape index: {}]
  %s4 = inlined_call_operand.vmem [shape: f32[1,2], index: 4, kind: input, shape index: {}]
  %s5 = inlined_call_operand.hbm [shape: f32[2,2], index: 5, kind: output, shape index: {}]
  %s6 = sld [smem:[#allocation0]]
  $region30: #{bert_classifier_forward.7} parent=0
    _
  %s8 = ssub.s32 1, %s6
  %s9 = scalar_select 0, %s8, %s6
  $region1: #{bert_classifier_forward.7} parent=0
    #allocation2 [shape = 'u8[1024]{0}', space=vmem, size = 0x400, scoped, tag = 'output window, operand 0, single buffered']
    #allocation3 [shape = 's32[1]{0}', space=sflag, size = 0x4, scoped, tag = 'scoped memory for bert_classifier_forward.7']
    %10 = vsyncpa [#allocation3], 0
    // Predicated region
    $region2: #{bert_classifier_forward.7} parent=1 // pred_check
      _
    $region3: #{bert_classifier_forward.7} parent=1 // pred_check_branch
      %12 = sbr.rel (0) target = $region5
    $region4: #{bert_classifier_forward.7} parent=1 // pred_region
      _
    $region5: #{bert_classifier_forward.7} parent=1 // pred_fallthru
      _
    // Predicated region
    $region6: #{bert_classifier_forward.7} parent=1 // pred_check
      _
    $region7: #{bert_classifier_forward.7} parent=1 // pred_check_branch
      %14 = sbr.rel (0) target = $region9
    $region8: #{bert_classifier_forward.7} parent=1 // pred_region
      _
    $region9: #{bert_classifier_forward.7} parent=1 // pred_fallthru
      _
    // Predicated region
    $region10: #{bert_classifier_forward.7} parent=1 // pred_check
      _
    $region11: #{bert_classifier_forward.7} parent=1 // pred_check_branch
      %16 = sbr.rel (0) target = $region13
    $region12: #{bert_classifier_forward.7} parent=1 // pred_region
      _
    $region13: #{bert_classifier_forward.7} parent=1 // pred_fallthru
      _
    // Predicated region
    $region14: #{bert_classifier_forward.7} parent=1 // pred_check
      _
    $region15: #{bert_classifier_forward.7} parent=1 // pred_check_branch
      %18 = sbr.rel (0) target = $region17
    $region16: #{bert_classifier_forward.7} parent=1 // pred_region
      _
    $region17: #{bert_classifier_forward.7} parent=1 // pred_fallthru
      _
    // Predicated region
    $region18: #{bert_classifier_forward.7} parent=1 // pred_check
      _
    $region19: #{bert_classifier_forward.7} parent=1 // pred_check_branch
      %20 = sbr.rel (0) target = $region21
    $region20: #{bert_classifier_forward.7} parent=1 // pred_region
      _
    $region21: #{bert_classifier_forward.7} parent=1 // pred_fallthru
      _
    %v21 = vld [vmem:[%s0] sm:$0x3]
    %v22 = vld [vmem:[%s1] sm:$0xff]
    %v23 = vld [vmem:[%s1 + $0x8] sm:$0xff]
    %v24 = vld [vmem:[%s1 + $0x10] sm:$0xff]
    %v25 = vld [vmem:[%s1 + $0x18] sm:$0xff]
    %v26 = vld [vmem:[%s2] sm:$0x1]
    %v28 = vperm.slane %v26, 0
    %vm30 = vcmask 261120
    %v32 = vsel %vm30, %v21, 0
    %34 = vmatpush.msra.mxu0 0.0
    %35 = vmatpush.msra.mxu0 0.0
    %36 = vmatpush.msra.mxu0 0.0
    %37 = vmatpush.msra.mxu0 0.0
    %38 = vmatpush.msra.mxu0 0.0
    %39 = vmatpush.msra.mxu0 0.0
    %40 = vmatpush.msra.mxu0 0.0
    %41 = vmatpush.msra.mxu0 0.0
    %42 = vmatpush.msra.mxu0 0.0
    %43 = vmatpush.msra.mxu0 0.0
    %44 = vmatpush.msra.mxu0 0.0
    %45 = vmatpush.msra.mxu0 0.0
    %46 = vmatpush.msra.mxu0 %v25
    %47 = vmatpush.msra.mxu0 %v24
    %48 = vmatpush.msra.mxu0 %v23
    %49 = vmatpush.msra.mxu0 %v22
    %50 = vmatmul.f32.gmra.mxu0 %v32
    %v51 = vpop.f32.mrf.mxu0
    %v52 = vadd.f32 %v28, %v51
    %53 = vdwg.mxu0
    %v54 = vtanh.pop %v52
    %v55 = vld [vmem:[%s3] sm:$0xff]
    %v56 = vld [vmem:[%s3 + $0x8] sm:$0xff]
    %v57 = vld [vmem:[%s3 + $0x10] sm:$0xff]
    %v58 = vld [vmem:[%s3 + $0x18] sm:$0xff]
    %v59 = vld [vmem:[%s4] sm:$0x1]
    %v61 = vperm.slane %v59, 0
    %v64 = vsel %vm30, %v54, 0
    %66 = vmatpush.msra.mxu0 0.0
    %67 = vmatpush.msra.mxu0 0.0
    %68 = vmatpush.msra.mxu0 0.0
    %69 = vmatpush.msra.mxu0 0.0
    %70 = vmatpush.msra.mxu0 0.0
    %71 = vmatpush.msra.mxu0 0.0
    %72 = vmatpush.msra.mxu0 0.0
    %73 = vmatpush.msra.mxu0 0.0
    %74 = vmatpush.msra.mxu0 0.0
    %75 = vmatpush.msra.mxu0 0.0
    %76 = vmatpush.msra.mxu0 0.0
    %77 = vmatpush.msra.mxu0 0.0
    %78 = vmatpush.msra.mxu0 %v58
    %79 = vmatpush.msra.mxu0 %v57
    %80 = vmatpush.msra.mxu0 %v56
    %81 = vmatpush.msra.mxu0 %v55
    %82 = vmatmul.f32.gmra.mxu0 %v64
    %v83 = vpop.f32.mrf.mxu0
    %v84 = vadd.f32 %v61, %v83
    %85 = vdwg.mxu0
    %vm86 = vcmask 9216
    %87 = vst.msk [vmem:[#allocation2] sm:$0x3] %vm86, %v84
    // Predicated region
    $region22: #{bert_classifier_forward.7} parent=1 // pred_check
      _
    $region23: #{bert_classifier_forward.7} parent=1 // pred_check_branch
      %89 = sbr.rel (0) target = $region25
    $region24: #{bert_classifier_forward.7} parent=1 // pred_region
      %91 = vsyncadd [#allocation3], 0
      %s93 = sshll.u32 [#allocation2], 4
      %s94 = int_to_ptr.vmem [resolvable:$true] %s93
      %s95 = sshll.u32 %s5, 4
      %s96 = int_to_ptr.hbm [resolvable:$true] %s95
      %98 = dma.vmem_to_hbm [thread:$0]  %s94, 32, %s96, [#allocation3]
    $region25: #{bert_classifier_forward.7} parent=1 // pred_fallthru
      _
    // Predicated region
    $region26: #{bert_classifier_forward.7} parent=1 // pred_check
      _
    $region27: #{bert_classifier_forward.7} parent=1 // pred_check_branch
      %100 = sbr.rel (0) target = $region29
    $region28: #{bert_classifier_forward.7} parent=1 // pred_region
      %102 = dma.done [#allocation3], 32
    $region29: #{bert_classifier_forward.7} parent=1 // pred_fallthru
      _
    %103 = vsyncpa [#allocation3], 1

// kernel: bert_classifier_forward.4
$region0: #{bert_classifier_forward.4}
  #allocation0 [shape = 'u32[]', space=smem, size = 0x4, offset = 0x4, fixed_abs, tag = 'smem constant byte address 0x4 - core index']
  #allocation1 [shape = 'u32[72,128]{1,0:T(1,128)}', space=vmem, size = 0x9000, scoped, tag = 'internal scratch']
  %s0 = inlined_call_operand.vmem [shape: f32[2,8,32], index: 0, kind: input, shape index: {}]
  %s1 = inlined_call_operand.vmem [shape: f32[1,32], index: 1, kind: input, shape index: {}]
  %s2 = inlined_call_operand.vmem [shape: f32[1,32], index: 2, kind: input, shape index: {}]
  %s3 = inlined_call_operand.vmem [shape: f32[2,8,32], index: 3, kind: output, shape index: {}]
  %s4 = sld [smem:[#allocation0]]
  $region45: #{bert_classifier_forward.4} parent=0
    _
  %s6 = ssub.s32 1, %s4
  %s7 = scalar_select 0, %s6, %s4
  loop: start=0, step=1, limit=4
  $region2: #{bert_classifier_forward.4} parent=0 // loop_pre_header
    _
  $region3: #{bert_classifier_forward.4} parent=0 // loop_header
    %s9 = sphi 0, %s13
    %p10 = scmp.ge.s32.totalorder %s9, 4
    %s19 = sphi 0, %s21
    %s22 = sphi 0, %s19
    %s23 = sphi 0, %s22
    %s39 = sphi 0, %s23
    %s43 = sphi 0, %s43
    %s45 = sphi 0, %s43
    %s46 = sphi 0, %s45
    %s60 = sphi 0, %s46
    %s64 = sphi 0, %s64
    %s66 = sphi 0, %s64
    %s67 = sphi 0, %s66
    %s81 = sphi 0, %s67
    %s87 = sphi 0, %s89
    %s90 = sphi 0, %s87
    %s91 = sphi 0, %s90
    %s107 = sphi 0, %s91
  $region4: #{bert_classifier_forward.4} parent=0 // loop_header_branch
    %12 = sbr.rel (%p10) target = $region8
  $region5: #{bert_classifier_forward.4} parent=0 // loop_body
    %s14 = ssub.s32 %s9, 1
    %s15 = ssub.s32 %s9, 2
    %s16 = sadd.s32 %s9, 1
    %s17 = ssub.s32 %s9, %s16
    %p18 = scmp.eq.s32.totalorder %s17, 0
    %s20 = sadd.s32 %s19, 1
    %s21 = scalar_select %p18, %s19, %s20
    %p24 = pneg %p18
    %p25 = scmp.eq.s32.totalorder %s9, 1
    %p26 = por %p24, %p25
    %p27 = scmp.ne.s32.totalorder %s19, %s22
    %p28 = scmp.eq.s32.totalorder %s9, 0
    %p29 = por %p27, %p28
    %p30 = scmp.ne.s32.totalorder %s19, %s22
    %p31 = scmp.eq.s32.totalorder %s14, 1
    %p32 = por %p30, %p31
    %p33 = scmp.ne.s32.totalorder %s22, %s23
    %p34 = scmp.eq.s32.totalorder %s14, 0
    %p35 = por %p33, %p34
    %p36 = scmp.ne.s32.totalorder %s22, %s23
    %p37 = scmp.eq.s32.totalorder %s15, 1
    %p38 = por %p36, %p37
    %p40 = scmp.ne.s32.totalorder %s23, %s39
    %p41 = scmp.eq.s32.totalorder %s15, 0
    %p42 = por %p40, %p41
    %s44 = sadd.s32 %s43, 1
    %p47 = scmp.eq.s32.totalorder %s9, 1
    %p48 = scmp.ne.s32.totalorder %s43, %s45
    %p49 = scmp.eq.s32.totalorder %s9, 0
    %p50 = por %p48, %p49
    %p51 = scmp.ne.s32.totalorder %s43, %s45
    %p52 = scmp.eq.s32.totalorder %s14, 1
    %p53 = por %p51, %p52
    %p54 = scmp.ne.s32.totalorder %s45, %s46
    %p55 = scmp.eq.s32.totalorder %s14, 0
    %p56 = por %p54, %p55
    %p57 = scmp.ne.s32.totalorder %s45, %s46
    %p58 = scmp.eq.s32.totalorder %s15, 1
    %p59 = por %p57, %p58
    %p61 = scmp.ne.s32.totalorder %s46, %s60
    %p62 = scmp.eq.s32.totalorder %s15, 0
    %p63 = por %p61, %p62
    %s65 = sadd.s32 %s64, 1
    %p68 = scmp.eq.s32.totalorder %s9, 1
    %p69 = scmp.ne.s32.totalorder %s64, %s66
    %p70 = scmp.eq.s32.totalorder %s9, 0
    %p71 = por %p69, %p70
    %p72 = scmp.ne.s32.totalorder %s64, %s66
    %p73 = scmp.eq.s32.totalorder %s14, 1
    %p74 = por %p72, %p73
    %p75 = scmp.ne.s32.totalorder %s66, %s67
    %p76 = scmp.eq.s32.totalorder %s14, 0
    %p77 = por %p75, %p76
    %p78 = scmp.ne.s32.totalorder %s66, %s67
    %p79 = scmp.eq.s32.totalorder %s15, 1
    %p80 = por %p78, %p79
    %p82 = scmp.ne.s32.totalorder %s67, %s81
    %p83 = scmp.eq.s32.totalorder %s15, 0
    %p84 = por %p82, %p83
    %s85 = ssub.s32 %s9, %s16
    %p86 = scmp.eq.s32.totalorder %s85, 0
    %s88 = sadd.s32 %s87, 1
    %s89 = scalar_select %p86, %s87, %s88
    %p92 = pneg %p86
    %p93 = scmp.eq.s32.totalorder %s9, 1
    %p94 = por %p92, %p93
    %p95 = scmp.ne.s32.totalorder %s87, %s90
    %p96 = scmp.eq.s32.totalorder %s9, 0
    %p97 = por %p95, %p96
    %p98 = scmp.ne.s32.totalorder %s87, %s90
    %p99 = scmp.eq.s32.totalorder %s14, 1
    %p100 = por %p98, %p99
    %p101 = scmp.ne.s32.totalorder %s90, %s91
    %p102 = scmp.eq.s32.totalorder %s14, 0
    %p103 = por %p101, %p102
    %p104 = scmp.ne.s32.totalorder %s90, %s91
    %p105 = scmp.eq.s32.totalorder %s15, 1
    %p106 = por %p104, %p105
    %p108 = scmp.ne.s32.totalorder %s91, %s107
    %p109 = scmp.eq.s32.totalorder %s15, 0
    %p110 = por %p108, %p109
    %p111 = scmp.le.s32.totalorder 1, %s9
    %p112 = scmp.lt.s32.totalorder %s9, 3
    %p113 = pnand %p111, %p112
    %p114 = pneg %p113
    // Predicated region
    $region9: #{bert_classifier_forward.4} parent=5 // pred_check
      _
    $region10: #{bert_classifier_forward.4} parent=5 // pred_check_branch
      %116 = sbr.rel (%p113) target = $region12
    $region11: #{bert_classifier_forward.4} parent=5 // pred_region
      %s117 = ssub.s32 %s9, 1
      // Predicated region
      $region13: #{bert_classifier_forward.4} parent=11 // pred_check
        %p118 = pneg %p56
      $region14: #{bert_classifier_forward.4} parent=11 // pred_check_branch
        %120 = sbr.rel (%p118) target = $region16
      $region15: #{bert_classifier_forward.4} parent=11 // pred_region
        _
      $region16: #{bert_classifier_forward.4} parent=11 // pred_fallthru
        _
      // Predicated region
      $region17: #{bert_classifier_forward.4} parent=11 // pred_check
        %p121 = pneg %p77
      $region18: #{bert_classifier_forward.4} parent=11 // pred_check_branch
        %123 = sbr.rel (%p121) target = $region20
      $region19: #{bert_classifier_forward.4} parent=11 // pred_region
        _
      $region20: #{bert_classifier_forward.4} parent=11 // pred_fallthru
        _
    $region12: #{bert_classifier_forward.4} parent=5 // pred_fallthru
      _
    %p124 = scmp.lt.s32.totalorder %s9, 2
    // Predicated region
    $region21: #{bert_classifier_forward.4} parent=5 // pred_check
      %p125 = pneg %p124
    $region22: #{bert_classifier_forward.4} parent=5 // pred_check_branch
      %127 = sbr.rel (%p125) target = $region24
    $region23: #{bert_classifier_forward.4} parent=5 // pred_region
      // Predicated region
      $region25: #{bert_classifier_forward.4} parent=23 // pred_check
        %p128 = pneg %p29
      $region26: #{bert_classifier_forward.4} parent=23 // pred_check_branch
        %130 = sbr.rel (%p128) target = $region28
      $region27: #{bert_classifier_forward.4} parent=23 // pred_region
        %p131 = scmp.lt.s32.totalorder %s9, 1
        %s132 = scalar_select %p131, %s9, 1
        %s133 = smul.addr %s132, 8
        %s134 = scalar_lea.vmem %s0, %s133
      $region28: #{bert_classifier_forward.4} parent=23 // pred_fallthru
        _
    $region24: #{bert_classifier_forward.4} parent=5 // pred_fallthru
      _
    %p135 = scmp.le.s32.totalorder 1, %s9
    %p136 = scmp.lt.s32.totalorder %s9, 3
    %p137 = pnand %p135, %p136
    %p138 = pneg %p137
    // Predicated region
    $region29: #{bert_classifier_forward.4} parent=5 // pred_check
      _
    $region30: #{bert_classifier_forward.4} parent=5 // pred_check_branch
      %140 = sbr.rel (%p137) target = $region32
    $region31: #{bert_classifier_forward.4} parent=5 // pred_region
      %s141 = ssub.s32 %s9, 1
      %p142 = scmp.lt.s32.totalorder %s14, 1
      %s143 = scalar_select %p142, %s14, 1
      %s144 = smul.addr %s143, 8
      %s145 = scalar_lea.vmem %s0, %s144
      %p146 = pneg %p35
      %p147 = pneg %p32
      %p148 = pneg %p56
      %p149 = pneg %p53
      %p150 = pneg %p77
      %p151 = pneg %p74
      %p152 = pneg %p103
      %p153 = pneg %p100
      %p154 = scmp.lt.s32.totalorder %s14, 1
      %s155 = scalar_select %p154, %s14, 1
      %s156 = smul.addr %s155, 8
      %s157 = scalar_lea.vmem %s3, %s156
      %p158 = scmp.lt.s32.totalorder %s14, 1
      %s159 = scalar_select %p158, %s14, 1
      %s160 = smul.addr %s159, 8
      %s161 = scalar_lea.vmem %s0, %s160
      %p162 = scmp.lt.s32.totalorder %s14, 1
      %s163 = scalar_select %p162, %s14, 1
      %s164 = smul.addr %s163, 8
      %s165 = scalar_lea.vmem %s3, %s164
      %v166 = vld [vmem:[%s161] sm:$0xff]
      %v167 = vld [vmem:[%s1] sm:$0x1]
      %v168 = vld [vmem:[%s2] sm:$0x1]
      %vm169 = vcmask 261120
      %v170 = vsel %vm169, %v166, 0.0
      %171 = vadd.xlane.f32.xlu0 %v170
      %v172 = vpop.xlane.xlu0 %171
      %v173 = vrcp.pop 32.0
      %v174 = vmul.f32 32.0, %v173
      %v175 = vsub.f32 1.0, %v174
      %v176 = vmul.f32 %v173, %v175
      %v177 = vadd.f32 %v173, %v176
      %vm178 = vweird.f32 %v173
      %v179 = vsel %vm178, %v173, %v177
      %v180 = vmul.f32 %v172, %v179
      %v181 = vsub.f32 %v166, %v180
      %v182 = vmul.f32 %v181, %v181
      %v183 = vsel %vm169, %v182, 0.0
      %184 = vadd.xlane.f32.xlu0 %v183
      %v185 = vpop.xlane.xlu0 %184
      %v186 = vmul.f32 %v185, %v179
      %v187 = vadd.f32 %v186, 1e-12
      %v188 = vrsqrt.pop %v187
      %v189 = vmul.f32 %v188, %v187
      %v190 = vmul.f32 %v189, %v188
      %v191 = vmul.f32 0.5, %v190
      %v192 = vsub.f32 1.5, %v191
      %v193 = vmul.f32 %v188, %v192
      %vm194 = vweird.f32 %v187
      %vm195 = vweird.f32 %v188
      %vm196 = vmor %vm194, %vm195
      %v197 = vsel %vm196, %v188, %v193
      %v198 = vmul.f32 %v181, %v197
      %v200 = vperm.slane %v167, 0
      %v202 = vmul.f32 %v198, %v200
      %v204 = vperm.slane %v168, 0
      %v206 = vadd.f32 %v202, %v204
      %207 = vst.msk [vmem:[%s165] sm:$0xff] %vm169, %v206
      %p208 = scmp.lt.s32.totalorder %s14, 1
      %s209 = scalar_select %p208, %s14, 1
      %s210 = smul.addr %s209, 8
      %s211 = scalar_lea.vmem %s3, %s210
      // Predicated region
      $region33: #{bert_classifier_forward.4} parent=31 // pred_check
        %p212 = pneg %p100
      $region34: #{bert_classifier_forward.4} parent=31 // pred_check_branch
        %214 = sbr.rel (%p212) target = $region36
      $region35: #{bert_classifier_forward.4} parent=31 // pred_region
        _
      $region36: #{bert_classifier_forward.4} parent=31 // pred_fallthru
        _
    $region32: #{bert_classifier_forward.4} parent=5 // pred_fallthru
      _
    %p215 = scmp.le.s32.totalorder 2, %s9
    // Predicated region
    $region37: #{bert_classifier_forward.4} parent=5 // pred_check
      %p216 = pneg %p215
    $region38: #{bert_classifier_forward.4} parent=5 // pred_check_branch
      %218 = sbr.rel (%p216) target = $region40
    $region39: #{bert_classifier_forward.4} parent=5 // pred_region
      %s219 = ssub.s32 %s9, 2
      // Predicated region
      $region41: #{bert_classifier_forward.4} parent=39 // pred_check
        %p220 = pneg %p106
      $region42: #{bert_classifier_forward.4} parent=39 // pred_check_branch
        %222 = sbr.rel (%p220) target = $region44
      $region43: #{bert_classifier_forward.4} parent=39 // pred_region
        %p223 = scmp.lt.s32.totalorder %s15, 1
        %s224 = scalar_select %p223, %s15, 1
        %s225 = smul.addr %s224, 8
        %s226 = scalar_lea.vmem %s3, %s225
      $region44: #{bert_classifier_forward.4} parent=39 // pred_fallthru
        _
    $region40: #{bert_classifier_forward.4} parent=5 // pred_fallthru
      _
  $region6: #{bert_classifier_forward.4} parent=0 // loop_footer
    %s13 = sadd.s32 1, %s9
  $region7: #{bert_classifier_forward.4} parent=0 // loop_footer_branch
    %8 = sbr.rel target = $region3
  $region8: #{bert_classifier_forward.4} parent=0 // loop_exit
    _

// kernel: bert_classifier_forward.5
$region0: #{bert_classifier_forward.5}
  #allocation0 [shape = 'u32[]', space=smem, size = 0x4, offset = 0x4, fixed_abs, tag = 'smem constant byte address 0x4 - core index']
  #allocation1 [shape = 'u32[72,128]{1,0:T(1,128)}', space=vmem, size = 0x9000, scoped, tag = 'internal scratch']
  %s0 = inlined_call_operand.vmem [shape: f32[2,8,32], index: 0, kind: input, shape index: {}]
  %s1 = inlined_call_operand.vmem [shape: f32[2,1,8], index: 1, kind: input, shape index: {}]
  %s2 = inlined_call_operand.vmem [shape: f32[32,96], index: 2, kind: input, shape index: {}]
  %s3 = inlined_call_operand.vmem [shape: f32[1,96], index: 3, kind: input, shape index: {}]
  %s4 = inlined_call_operand.vmem [shape: f32[32,32], index: 4, kind: input, shape index: {}]
  %s5 = inlined_call_operand.vmem [shape: f32[1,32], index: 5, kind: input, shape index: {}]
  %s6 = inlined_call_operand.vmem [shape: f32[1,32], index: 6, kind: input, shape index: {}]
  %s7 = inlined_call_operand.vmem [shape: f32[1,32], index: 7, kind: input, shape index: {}]
  %s8 = inlined_call_operand.vmem [shape: f32[32,64], index: 8, kind: input, shape index: {}]
  %s9 = inlined_call_operand.vmem [shape: f32[1,64], index: 9, kind: input, shape index: {}]
  %s10 = inlined_call_operand.vmem [shape: f32[64,32], index: 10, kind: input, shape index: {}]
  %s11 = inlined_call_operand.vmem [shape: f32[1,32], index: 11, kind: input, shape index: {}]
  %s12 = inlined_call_operand.vmem [shape: f32[1,32], index: 12, kind: input, shape index: {}]
  %s13 = inlined_call_operand.vmem [shape: f32[1,32], index: 13, kind: input, shape index: {}]
  %s14 = inlined_call_operand.vmem [shape: f32[2,8,32], index: 14, kind: output, shape index: {}]
  %s15 = sld [smem:[#allocation0]]
  $region89: #{bert_classifier_forward.5} parent=0
    _
  %s17 = ssub.s32 1, %s15
  %s18 = scalar_select 0, %s17, %s15
  loop: start=0, step=1, limit=4
  $region2: #{bert_classifier_forward.5} parent=0 // loop_pre_header
    _
  $region3: #{bert_classifier_forward.5} parent=0 // loop_header
    %s20 = sphi 0, %s24
    %p21 = scmp.ge.s32.totalorder %s20, 4
    %s30 = sphi 0, %s32
    %s33 = sphi 0, %s30
    %s34 = sphi 0, %s33
    %s50 = sphi 0, %s34
    %s56 = sphi 0, %s58
    %s59 = sphi 0, %s56
    %s60 = sphi 0, %s59
    %s76 = sphi 0, %s60
    %s80 = sphi 0, %s80
    %s82 = sphi 0, %s80
    %s83 = sphi 0, %s82
    %s97 = sphi 0, %s83
    %s101 = sphi 0, %s101
    %s103 = sphi 0, %s101
    %s104 = sphi 0, %s103
    %s118 = sphi 0, %s104
    %s122 = sphi 0, %s122
    %s124 = sphi 0, %s122
    %s125 = sphi 0, %s124
    %s139 = sphi 0, %s125
    %s143 = sphi 0, %s143
    %s145 = sphi 0, %s143
    %s146 = sphi 0, %s145
    %s160 = sphi 0, %s146
    %s164 = sphi 0, %s164
    %s166 = sphi 0, %s164
    %s167 = sphi 0, %s166
    %s181 = sphi 0, %s167
    %s185 = sphi 0, %s185
    %s187 = sphi 0, %s185
    %s188 = sphi 0, %s187
    %s202 = sphi 0, %s188
    %s206 = sphi 0, %s206
    %s208 = sphi 0, %s206
    %s209 = sphi 0, %s208
    %s223 = sphi 0, %s209
    %s227 = sphi 0, %s227
    %s229 = sphi 0, %s227
    %s230 = sphi 0, %s229
    %s244 = sphi 0, %s230
    %s248 = sphi 0, %s248
    %s250 = sphi 0, %s248
    %s251 = sphi 0, %s250
    %s265 = sphi 0, %s251
    %s269 = sphi 0, %s269
    %s271 = sphi 0, %s269
    %s272 = sphi 0, %s271
    %s286 = sphi 0, %s272
    %s290 = sphi 0, %s290
    %s292 = sphi 0, %s290
    %s293 = sphi 0, %s292
    %s307 = sphi 0, %s293
    %s311 = sphi 0, %s311
    %s313 = sphi 0, %s311
    %s314 = sphi 0, %s313
    %s328 = sphi 0, %s314
    %s334 = sphi 0, %s336
    %s337 = sphi 0, %s334
    %s338 = sphi 0, %s337
    %s354 = sphi 0, %s338
  $region4: #{bert_classifier_forward.5} parent=0 // loop_header_branch
    %23 = sbr.rel (%p21) target = $region8
  $region5: #{bert_classifier_forward.5} parent=0 // loop_body
    %s25 = ssub.s32 %s20, 1
    %s26 = ssub.s32 %s20, 2
    %s27 = sadd.s32 %s20, 1
    %s28 = ssub.s32 %s20, %s27
    %p29 = scmp.eq.s32.totalorder %s28, 0
    %s31 = sadd.s32 %s30, 1
    %s32 = scalar_select %p29, %s30, %s31
    %p35 = pneg %p29
    %p36 = scmp.eq.s32.totalorder %s20, 1
    %p37 = por %p35, %p36
    %p38 = scmp.ne.s32.totalorder %s30, %s33
    %p39 = scmp.eq.s32.totalorder %s20, 0
    %p40 = por %p38, %p39
    %p41 = scmp.ne.s32.totalorder %s30, %s33
    %p42 = scmp.eq.s32.totalorder %s25, 1
    %p43 = por %p41, %p42
    %p44 = scmp.ne.s32.totalorder %s33, %s34
    %p45 = scmp.eq.s32.totalorder %s25, 0
    %p46 = por %p44, %p45
    %p47 = scmp.ne.s32.totalorder %s33, %s34
    %p48 = scmp.eq.s32.totalorder %s26, 1
    %p49 = por %p47, %p48
    %p51 = scmp.ne.s32.totalorder %s34, %s50
    %p52 = scmp.eq.s32.totalorder %s26, 0
    %p53 = por %p51, %p52
    %s54 = ssub.s32 %s20, %s27
    %p55 = scmp.eq.s32.totalorder %s54, 0
    %s57 = sadd.s32 %s56, 1
    %s58 = scalar_select %p55, %s56, %s57
    %p61 = pneg %p55
    %p62 = scmp.eq.s32.totalorder %s20, 1
    %p63 = por %p61, %p62
    %p64 = scmp.ne.s32.totalorder %s56, %s59
    %p65 = scmp.eq.s32.totalorder %s20, 0
    %p66 = por %p64, %p65
    %p67 = scmp.ne.s32.totalorder %s56, %s59
    %p68 = scmp.eq.s32.totalorder %s25, 1
    %p69 = por %p67, %p68
    %p70 = scmp.ne.s32.totalorder %s59, %s60
    %p71 = scmp.eq.s32.totalorder %s25, 0
    %p72 = por %p70, %p71
    %p73 = scmp.ne.s32.totalorder %s59, %s60
    %p74 = scmp.eq.s32.totalorder %s26, 1
    %p75 = por %p73, %p74
    %p77 = scmp.ne.s32.totalorder %s60, %s76
    %p78 = scmp.eq.s32.totalorder %s26, 0
    %p79 = por %p77, %p78
    %s81 = sadd.s32 %s80, 1
    %p84 = scmp.eq.s32.totalorder %s20, 1
    %p85 = scmp.ne.s32.totalorder %s80, %s82
    %p86 = scmp.eq.s32.totalorder %s20, 0
    %p87 = por %p85, %p86
    %p88 = scmp.ne.s32.totalorder %s80, %s82
    %p89 = scmp.eq.s32.totalorder %s25, 1
    %p90 = por %p88, %p89
    %p91 = scmp.ne.s32.totalorder %s82, %s83
    %p92 = scmp.eq.s32.totalorder %s25, 0
    %p93 = por %p91, %p92
    %p94 = scmp.ne.s32.totalorder %s82, %s83
    %p95 = scmp.eq.s32.totalorder %s26, 1
    %p96 = por %p94, %p95
    %p98 = scmp.ne.s32.totalorder %s83, %s97
    %p99 = scmp.eq.s32.totalorder %s26, 0
    %p100 = por %p98, %p99
    %s102 = sadd.s32 %s101, 1
    %p105 = scmp.eq.s32.totalorder %s20, 1
    %p106 = scmp.ne.s32.totalorder %s101, %s103
    %p107 = scmp.eq.s32.totalorder %s20, 0
    %p108 = por %p106, %p107
    %p109 = scmp.ne.s32.totalorder %s101, %s103
    %p110 = scmp.eq.s32.totalorder %s25, 1
    %p111 = por %p109, %p110
    %p112 = scmp.ne.s32.totalorder %s103, %s104
    %p113 = scmp.eq.s32.totalorder %s25, 0
    %p114 = por %p112, %p113
    %p115 = scmp.ne.s32.totalorder %s103, %s104
    %p116 = scmp.eq.s32.totalorder %s26, 1
    %p117 = por %p115, %p116
    %p119 = scmp.ne.s32.totalorder %s104, %s118
    %p120 = scmp.eq.s32.totalorder %s26, 0
    %p121 = por %p119, %p120
    %s123 = sadd.s32 %s122, 1
    %p126 = scmp.eq.s32.totalorder %s20, 1
    %p127 = scmp.ne.s32.totalorder %s122, %s124
    %p128 = scmp.eq.s32.totalorder %s20, 0
    %p129 = por %p127, %p128
    %p130 = scmp.ne.s32.totalorder %s122, %s124
    %p131 = scmp.eq.s32.totalorder %s25, 1
    %p132 = por %p130, %p131
    %p133 = scmp.ne.s32.totalorder %s124, %s125
    %p134 = scmp.eq.s32.totalorder %s25, 0
    %p135 = por %p133, %p134
    %p136 = scmp.ne.s32.totalorder %s124, %s125
    %p137 = scmp.eq.s32.totalorder %s26, 1
    %p138 = por %p136, %p137
    %p140 = scmp.ne.s32.totalorder %s125, %s139
    %p141 = scmp.eq.s32.totalorder %s26, 0
    %p142 = por %p140, %p141
    %s144 = sadd.s32 %s143, 1
    %p147 = scmp.eq.s32.totalorder %s20, 1
    %p148 = scmp.ne.s32.totalorder %s143, %s145
    %p149 = scmp.eq.s32.totalorder %s20, 0
    %p150 = por %p148, %p149
    %p151 = scmp.ne.s32.totalorder %s143, %s145
    %p152 = scmp.eq.s32.totalorder %s25, 1
    %p153 = por %p151, %p152
    %p154 = scmp.ne.s32.totalorder %s145, %s146
    %p155 = scmp.eq.s32.totalorder %s25, 0
    %p156 = por %p154, %p155
    %p157 = scmp.ne.s32.totalorder %s145, %s146
    %p158 = scmp.eq.s32.totalorder %s26, 1
    %p159 = por %p157, %p158
    %p161 = scmp.ne.s32.totalorder %s146, %s160
    %p162 = scmp.eq.s32.totalorder %s26, 0
    %p163 = por %p161, %p162
    %s165 = sadd.s32 %s164, 1
    %p168 = scmp.eq.s32.totalorder %s20, 1
    %p169 = scmp.ne.s32.totalorder %s164, %s166
    %p170 = scmp.eq.s32.totalorder %s20, 0
    %p171 = por %p169, %p170
    %p172 = scmp.ne.s32.totalorder %s164, %s166
    %p173 = scmp.eq.s32.totalorder %s25, 1
    %p174 = por %p172, %p173
    %p175 = scmp.ne.s32.totalorder %s166, %s167
    %p176 = scmp.eq.s32.totalorder %s25, 0
    %p177 = por %p175, %p176
    %p178 = scmp.ne.s32.totalorder %s166, %s167
    %p179 = scmp.eq.s32.totalorder %s26, 1
    %p180 = por %p178, %p179
    %p182 = scmp.ne.s32.totalorder %s167, %s181
    %p183 = scmp.eq.s32.totalorder %s26, 0
    %p184 = por %p182, %p183
    %s186 = sadd.s32 %s185, 1
    %p189 = scmp.eq.s32.totalorder %s20, 1
    %p190 = scmp.ne.s32.totalorder %s185, %s187
    %p191 = scmp.eq.s32.totalorder %s20, 0
    %p192 = por %p190, %p191
    %p193 = scmp.ne.s32.totalorder %s185, %s187
    %p194 = scmp.eq.s32.totalorder %s25, 1
    %p195 = por %p193, %p194
    %p196 = scmp.ne.s32.totalorder %s187, %s188
    %p197 = scmp.eq.s32.totalorder %s25, 0
    %p198 = por %p196, %p197
    %p199 = scmp.ne.s32.totalorder %s187, %s188
    %p200 = scmp.eq.s32.totalorder %s26, 1
    %p201 = por %p199, %p200
    %p203 = scmp.ne.s32.totalorder %s188, %s202
    %p204 = scmp.eq.s32.totalorder %s26, 0
    %p205 = por %p203, %p204
    %s207 = sadd.s32 %s206, 1
    %p210 = scmp.eq.s32.totalorder %s20, 1
    %p211 = scmp.ne.s32.totalorder %s206, %s208
    %p212 = scmp.eq.s32.totalorder %s20, 0
    %p213 = por %p211, %p212
    %p214 = scmp.ne.s32.totalorder %s206, %s208
    %p215 = scmp.eq.s32.totalorder %s25, 1
    %p216 = por %p214, %p215
    %p217 = scmp.ne.s32.totalorder %s208, %s209
    %p218 = scmp.eq.s32.totalorder %s25, 0
    %p219 = por %p217, %p218
    %p220 = scmp.ne.s32.totalorder %s208, %s209
    %p221 = scmp.eq.s32.totalorder %s26, 1
    %p222 = por %p220, %p221
    %p224 = scmp.ne.s32.totalorder %s209, %s223
    %p225 = scmp.eq.s32.totalorder %s26, 0
    %p226 = por %p224, %p225
    %s228 = sadd.s32 %s227, 1
    %p231 = scmp.eq.s32.totalorder %s20, 1
    %p232 = scmp.ne.s32.totalorder %s227, %s229
    %p233 = scmp.eq.s32.totalorder %s20, 0
    %p234 = por %p232, %p233
    %p235 = scmp.ne.s32.totalorder %s227, %s229
    %p236 = scmp.eq.s32.totalorder %s25, 1
    %p237 = por %p235, %p236
    %p238 = scmp.ne.s32.totalorder %s229, %s230
    %p239 = scmp.eq.s32.totalorder %s25, 0
    %p240 = por %p238, %p239
    %p241 = scmp.ne.s32.totalorder %s229, %s230
    %p242 = scmp.eq.s32.totalorder %s26, 1
    %p243 = por %p241, %p242
    %p245 = scmp.ne.s32.totalorder %s230, %s244
    %p246 = scmp.eq.s32.totalorder %s26, 0
    %p247 = por %p245, %p246
    %s249 = sadd.s32 %s248, 1
    %p252 = scmp.eq.s32.totalorder %s20, 1
    %p253 = scmp.ne.s32.totalorder %s248, %s250
    %p254 = scmp.eq.s32.totalorder %s20, 0
    %p255 = por %p253, %p254
    %p256 = scmp.ne.s32.totalorder %s248, %s250
    %p257 = scmp.eq.s32.totalorder %s25, 1
    %p258 = por %p256, %p257
    %p259 = scmp.ne.s32.totalorder %s250, %s251
    %p260 = scmp.eq.s32.totalorder %s25, 0
    %p261 = por %p259, %p260
    %p262 = scmp.ne.s32.totalorder %s250, %s251
    %p263 = scmp.eq.s32.totalorder %s26, 1
    %p264 = por %p262, %p263
    %p266 = scmp.ne.s32.totalorder %s251, %s265
    %p267 = scmp.eq.s32.totalorder %s26, 0
    %p268 = por %p266, %p267
    %s270 = sadd.s32 %s269, 1
    %p273 = scmp.eq.s32.totalorder %s20, 1
    %p274 = scmp.ne.s32.totalorder %s269, %s271
    %p275 = scmp.eq.s32.totalorder %s20, 0
    %p276 = por %p274, %p275
    %p277 = scmp.ne.s32.totalorder %s269, %s271
    %p278 = scmp.eq.s32.totalorder %s25, 1
    %p279 = por %p277, %p278
    %p280 = scmp.ne.s32.totalorder %s271, %s272
    %p281 = scmp.eq.s32.totalorder %s25, 0
    %p282 = por %p280, %p281
    %p283 = scmp.ne.s32.totalorder %s271, %s272
    %p284 = scmp.eq.s32.totalorder %s26, 1
    %p285 = por %p283, %p284
    %p287 = scmp.ne.s32.totalorder %s272, %s286
    %p288 = scmp.eq.s32.totalorder %s26, 0
    %p289 = por %p287, %p288
    %s291 = sadd.s32 %s290, 1
    %p294 = scmp.eq.s32.totalorder %s20, 1
    %p295 = scmp.ne.s32.totalorder %s290, %s292
    %p296 = scmp.eq.s32.totalorder %s20, 0
    %p297 = por %p295, %p296
    %p298 = scmp.ne.s32.totalorder %s290, %s292
    %p299 = scmp.eq.s32.totalorder %s25, 1
    %p300 = por %p298, %p299
    %p301 = scmp.ne.s32.totalorder %s292, %s293
    %p302 = scmp.eq.s32.totalorder %s25, 0
    %p303 = por %p301, %p302
    %p304 = scmp.ne.s32.totalorder %s292, %s293
    %p305 = scmp.eq.s32.totalorder %s26, 1
    %p306 = por %p304, %p305
    %p308 = scmp.ne.s32.totalorder %s293, %s307
    %p309 = scmp.eq.s32.totalorder %s26, 0
    %p310 = por %p308, %p309
    %s312 = sadd.s32 %s311, 1
    %p315 = scmp.eq.s32.totalorder %s20, 1
    %p316 = scmp.ne.s32.totalorder %s311, %s313
    %p317 = scmp.eq.s32.totalorder %s20, 0
    %p318 = por %p316, %p317
    %p319 = scmp.ne.s32.totalorder %s311, %s313
    %p320 = scmp.eq.s32.totalorder %s25, 1
    %p321 = por %p319, %p320
    %p322 = scmp.ne.s32.totalorder %s313, %s314
    %p323 = scmp.eq.s32.totalorder %s25, 0
    %p324 = por %p322, %p323
    %p325 = scmp.ne.s32.totalorder %s313, %s314
    %p326 = scmp.eq.s32.totalorder %s26, 1
    %p327 = por %p325, %p326
    %p329 = scmp.ne.s32.totalorder %s314, %s328
    %p330 = scmp.eq.s32.totalorder %s26, 0
    %p331 = por %p329, %p330
    %s332 = ssub.s32 %s20, %s27
    %p333 = scmp.eq.s32.totalorder %s332, 0
    %s335 = sadd.s32 %s334, 1
    %s336 = scalar_select %p333, %s334, %s335
    %p339 = pneg %p333
    %p340 = scmp.eq.s32.totalorder %s20, 1
    %p341 = por %p339, %p340
    %p342 = scmp.ne.s32.totalorder %s334, %s337
    %p343 = scmp.eq.s32.totalorder %s20, 0
    %p344 = por %p342, %p343
    %p345 = scmp.ne.s32.totalorder %s334, %s337
    %p346 = scmp.eq.s32.totalorder %s25, 1
    %p347 = por %p345, %p346
    %p348 = scmp.ne.s32.totalorder %s337, %s338
    %p349 = scmp.eq.s32.totalorder %s25, 0
    %p350 = por %p348, %p349
    %p351 = scmp.ne.s32.totalorder %s337, %s338
    %p352 = scmp.eq.s32.totalorder %s26, 1
    %p353 = por %p351, %p352
    %p355 = scmp.ne.s32.totalorder %s338, %s354
    %p356 = scmp.eq.s32.totalorder %s26, 0
    %p357 = por %p355, %p356
    %p358 = scmp.le.s32.totalorder 1, %s20
    %p359 = scmp.lt.s32.totalorder %s20, 3
    %p360 = pnand %p358, %p359
    %p361 = pneg %p360
    // Predicated region
    $region9: #{bert_classifier_forward.5} parent=5 // pred_check
      _
    $region10: #{bert_classifier_forward.5} parent=5 // pred_check_branch
      %363 = sbr.rel (%p360) target = $region12
    $region11: #{bert_classifier_forward.5} parent=5 // pred_region
      %s364 = ssub.s32 %s20, 1
      // Predicated region
      $region13: #{bert_classifier_forward.5} parent=11 // pred_check
        %p365 = pneg %p93
      $region14: #{bert_classifier_forward.5} parent=11 // pred_check_branch
        %367 = sbr.rel (%p365) target = $region16
      $region15: #{bert_classifier_forward.5} parent=11 // pred_region
        _
      $region16: #{bert_classifier_forward.5} parent=11 // pred_fallthru
        _
      // Predicated region
      $region17: #{bert_classifier_forward.5} parent=11 // pred_check
        %p368 = pneg %p114
      $region18: #{bert_classifier_forward.5} parent=11 // pred_check_branch
        %370 = sbr.rel (%p368) target = $region20
      $region19: #{bert_classifier_forward.5} parent=11 // pred_region
        _
      $region20: #{bert_classifier_forward.5} parent=11 // pred_fallthru
        _
      // Predicated region
      $region21: #{bert_classifier_forward.5} parent=11 // pred_check
        %p371 = pneg %p135
      $region22: #{bert_classifier_forward.5} parent=11 // pred_check_branch
        %373 = sbr.rel (%p371) target = $region24
      $region23: #{bert_classifier_forward.5} parent=11 // pred_region
        _
      $region24: #{bert_classifier_forward.5} parent=11 // pred_fallthru
        _
      // Predicated region
      $region25: #{bert_classifier_forward.5} parent=11 // pred_check
        %p374 = pneg %p156
      $region26: #{bert_classifier_forward.5} parent=11 // pred_check_branch
        %376 = sbr.rel (%p374) target = $region28
      $region27: #{bert_classifier_forward.5} parent=11 // pred_region
        _
      $region28: #{bert_classifier_forward.5} parent=11 // pred_fallthru
        _
      // Predicated region
      $region29: #{bert_classifier_forward.5} parent=11 // pred_check
        %p377 = pneg %p177
      $region30: #{bert_classifier_forward.5} parent=11 // pred_check_branch
        %379 = sbr.rel (%p377) target = $region32
      $region31: #{bert_classifier_forward.5} parent=11 // pred_region
        _
      $region32: #{bert_classifier_forward.5} parent=11 // pred_fallthru
        _
      // Predicated region
      $region33: #{bert_classifier_forward.5} parent=11 // pred_check
        %p380 = pneg %p198
      $region34: #{bert_classifier_forward.5} parent=11 // pred_check_branch
        %382 = sbr.rel (%p380) target = $region36
      $region35: #{bert_classifier_forward.5} parent=11 // pred_region
        _
      $region36: #{bert_classifier_forward.5} parent=11 // pred_fallthru
        _
      // Predicated region
      $region37: #{bert_classifier_forward.5} parent=11 // pred_check
        %p383 = pneg %p219
      $region38: #{bert_classifier_forward.5} parent=11 // pred_check_branch
        %385 = sbr.rel (%p383) target = $region40
      $region39: #{bert_classifier_forward.5} parent=11 // pred_region
        _
      $region40: #{bert_classifier_forward.5} parent=11 // pred_fallthru
        _
      // Predicated region
      $region41: #{bert_classifier_forward.5} parent=11 // pred_check
        %p386 = pneg %p240
      $region42: #{bert_classifier_forward.5} parent=11 // pred_check_branch
        %388 = sbr.rel (%p386) target = $region44
      $region43: #{bert_classifier_forward.5} parent=11 // pred_region
        _
      $region44: #{bert_classifier_forward.5} parent=11 // pred_fallthru
        _
      // Predicated region
      $region45: #{bert_classifier_forward.5} parent=11 // pred_check
        %p389 = pneg %p261
      $region46: #{bert_classifier_forward.5} parent=11 // pred_check_branch
        %391 = sbr.rel (%p389) target = $region48
      $region47: #{bert_classifier_forward.5} parent=11 // pred_region
        _
      $region48: #{bert_classifier_forward.5} parent=11 // pred_fallthru
        _
      // Predicated region
      $region49: #{bert_classifier_forward.5} parent=11 // pred_check
        %p392 = pneg %p282
      $region50: #{bert_classifier_forward.5} parent=11 // pred_check_branch
        %394 = sbr.rel (%p392) target = $region52
      $region51: #{bert_classifier_forward.5} parent=11 // pred_region
        _
      $region52: #{bert_classifier_forward.5} parent=11 // pred_fallthru
        _
      // Predicated region
      $region53: #{bert_classifier_forward.5} parent=11 // pred_check
        %p395 = pneg %p303
      $region54: #{bert_classifier_forward.5} parent=11 // pred_check_branch
        %397 = sbr.rel (%p395) target = $region56
      $region55: #{bert_classifier_forward.5} parent=11 // pred_region
        _
      $region56: #{bert_classifier_forward.5} parent=11 // pred_fallthru
        _
      // Predicated region
      $region57: #{bert_classifier_forward.5} parent=11 // pred_check
        %p398 = pneg %p324
      $region58: #{bert_classifier_forward.5} parent=11 // pred_check_branch
        %400 = sbr.rel (%p398) target = $region60
      $region59: #{bert_classifier_forward.5} parent=11 // pred_region
        _
      $region60: #{bert_classifier_forward.5} parent=11 // pred_fallthru
        _
    $region12: #{bert_classifier_forward.5} parent=5 // pred_fallthru
      _
    %p401 = scmp.lt.s32.totalorder %s20, 2
    // Predicated region
    $region61: #{bert_classifier_forward.5} parent=5 // pred_check
      %p402 = pneg %p401
    $region62: #{bert_classifier_forward.5} parent=5 // pred_check_branch
      %404 = sbr.rel (%p402) target = $region64
    $region63: #{bert_classifier_forward.5} parent=5 // pred_region
      // Predicated region
      $region65: #{bert_classifier_forward.5} parent=63 // pred_check
        %p405 = pneg %p40
      $region66: #{bert_classifier_forward.5} parent=63 // pred_check_branch
        %407 = sbr.rel (%p405) target = $region68
      $region67: #{bert_classifier_forward.5} parent=63 // pred_region
        %p408 = scmp.lt.s32.totalorder %s20, 1
        %s409 = scalar_select %p408, %s20, 1
        %s410 = smul.addr %s409, 8
        %s411 = scalar_lea.vmem %s0, %s410
      $region68: #{bert_classifier_forward.5} parent=63 // pred_fallthru
        _
      // Predicated region
      $region69: #{bert_classifier_forward.5} parent=63 // pred_check
        %p412 = pneg %p66
      $region70: #{bert_classifier_forward.5} parent=63 // pred_check_branch
        %414 = sbr.rel (%p412) target = $region72
      $region71: #{bert_classifier_forward.5} parent=63 // pred_region
        %p415 = scmp.lt.s32.totalorder %s20, 1
        %s416 = scalar_select %p415, %s20, 1
        %s417 = scalar_lea.vmem %s1, %s416
      $region72: #{bert_classifier_forward.5} parent=63 // pred_fallthru
        _
    $region64: #{bert_classifier_forward.5} parent=5 // pred_fallthru
      _
    %p418 = scmp.le.s32.totalorder 1, %s20
    %p419 = scmp.lt.s32.totalorder %s20, 3
    %p420 = pnand %p418, %p419
    %p421 = pneg %p420
    // Predicated region
    $region73: #{bert_classifier_forward.5} parent=5 // pred_check
      _
    $region74: #{bert_classifier_forward.5} parent=5 // pred_check_branch
      %423 = sbr.rel (%p420) target = $region76
    $region75: #{bert_classifier_forward.5} parent=5 // pred_region
      %s424 = ssub.s32 %s20, 1
      %p425 = scmp.lt.s32.totalorder %s25, 1
      %s426 = scalar_select %p425, %s25, 1
      %s427 = smul.addr %s426, 8
      %s428 = scalar_lea.vmem %s0, %s427
      %p429 = pneg %p46
      %p430 = pneg %p43
      %p431 = scmp.lt.s32.totalorder %s25, 1
      %s432 = scalar_select %p431, %s25, 1
      %s433 = scalar_lea.vmem %s1, %s432
      %p434 = pneg %p72
      %p435 = pneg %p69
      %p436 = pneg %p93
      %p437 = pneg %p90
      %p438 = pneg %p114
      %p439 = pneg %p111
      %p440 = pneg %p135
      %p441 = pneg %p132
      %p442 = pneg %p156
      %p443 = pneg %p153
      %p444 = pneg %p177
      %p445 = pneg %p174
      %p446 = pneg %p198
      %p447 = pneg %p195
      %p448 = pneg %p219
      %p449 = pneg %p216
      %p450 = pneg %p240
      %p451 = pneg %p237
      %p452 = pneg %p261
      %p453 = pneg %p258
      %p454 = pneg %p282
      %p455 = pneg %p279
      %p456 = pneg %p303
      %p457 = pneg %p300
      %p458 = pneg %p324
      %p459 = pneg %p321
      %p460 = pneg %p350
      %p461 = pneg %p347
      %p462 = scmp.lt.s32.totalorder %s25, 1
      %s463 = scalar_select %p462, %s25, 1
      %s464 = smul.addr %s463, 8
      %s465 = scalar_lea.vmem %s14, %s464
      %p466 = scmp.lt.s32.totalorder %s25, 1
      %s467 = scalar_select %p466, %s25, 1
      %s468 = smul.addr %s467, 8
      %s469 = scalar_lea.vmem %s0, %s468
      %p470 = scmp.lt.s32.totalorder %s25, 1
      %s471 = scalar_select %p470, %s25, 1
      %s472 = scalar_lea.vmem %s1, %s471
      %p473 = scmp.lt.s32.totalorder %s25, 1
      %s474 = scalar_select %p473, %s25, 1
      %s475 = smul.addr %s474, 8
      %s476 = scalar_lea.vmem %s14, %s475
      %v477 = vld [vmem:[%s469] sm:$0xff]
      %v478 = vld [vmem:[%s472] sm:$0x1]
      %v479 = vld [vmem:[%s2] sm:$0xff]
      %v480 = vld [vmem:[%s2 + $0x8] sm:$0xff]
      %v481 = vld [vmem:[%s2 + $0x10] sm:$0xff]
      %v482 = vld [vmem:[%s2 + $0x18] sm:$0xff]
      %v483 = vld [vmem:[%s3] sm:$0x1]
      %v485 = vperm.slane %v483, 0
      %vm487 = vcmask 261120
      %v489 = vsel %vm487, %v477, 0
      %491 = vmatpush.msra.mxu0 0.0
      %492 = vmatpush.msra.mxu0 0.0
      %493 = vmatpush.msra.mxu0 0.0
      %494 = vmatpush.msra.mxu0 0.0
      %495 = vmatpush.msra.mxu0 0.0
      %496 = vmatpush.msra.mxu0 0.0
      %497 = vmatpush.msra.mxu0 0.0
      %498 = vmatpush.msra.mxu0 0.0
      %499 = vmatpush.msra.mxu0 0.0
      %500 = vmatpush.msra.mxu0 0.0
      %501 = vmatpush.msra.mxu0 0.0
      %502 = vmatpush.msra.mxu0 0.0
      %503 = vmatpush.msra.mxu0 %v482
      %504 = vmatpush.msra.mxu0 %v481
      %505 = vmatpush.msra.mxu0 %v480
      %506 = vmatpush.msra.mxu0 %v479
      %507 = vmatmul.f32.gmra.mxu0 %v489
      %v508 = vpop.f32.mrf.mxu0
      %v509 = vadd.f32 %v485, %v508
      %510 = vdwg.mxu0
      %v511 = vld [vmem:[%s4] sm:$0xff]
      %v512 = vld [vmem:[%s4 + $0x8] sm:$0xff]
      %v513 = vld [vmem:[%s4 + $0x10] sm:$0xff]
      %v514 = vld [vmem:[%s4 + $0x18] sm:$0xff]
      %516 = vrot.lane.b32.xlu0 %v509, 96
      %v517 = vpop.permute.xlu0 %516
      %vm518 = vcmask 130048
      %v519 = vsel %vm518, %v509, 0
      %v521 = vsel %vm518, %v517, 0
      %523 = vmatpush.xpose.msra.mxu0 0.0
      %524 = vmatpush.xpose.msra.mxu0 0.0
      %525 = vmatpush.xpose.msra.mxu0 0.0
      %526 = vmatpush.xpose.msra.mxu0 0.0
      %527 = vmatpush.xpose.msra.mxu0 0.0
      %528 = vmatpush.xpose.msra.mxu0 0.0
      %529 = vmatpush.xpose.msra.mxu0 0.0
      %530 = vmatpush.xpose.msra.mxu0 0.0
      %531 = vmatpush.xpose.msra.mxu0 0.0
      %532 = vmatpush.xpose.msra.mxu0 0.0
      %533 = vmatpush.xpose.msra.mxu0 0.0
      %534 = vmatpush.xpose.msra.mxu0 0.0
      %535 = vmatpush.xpose.msra.mxu0 0.0
      %536 = vmatpush.xpose.msra.mxu0 0.0
      %537 = vmatpush.xpose.msra.mxu0 0.0
      %538 = vmatpush.xpose.msra.mxu0 %v521
      %539 = vmatmul.f32.gmra.mxu0 %v519
      %v540 = vpop.f32.mrf.mxu0
      %v541 = vadd.f32 0.0, %v540
      %542 = vdwg.mxu0
      %v543 = vmul.f32 %v541, 0.25
      %v545 = vperm.slane %v478, 0
      %v547 = vadd.f32 %v543, %v545
      %vm548 = vcmask 64512
      %v549 = vsel %vm548, %v547, -inf
      %550 = vmax.xlane.f32.xlu0 %v549
      %v551 = vpop.xlane.xlu0 %550
      %v552 = vsub.f32 %v547, %v551
      %v553 = vmul.f32 %v552, 1.442695
      %v554 = vpow.pop %v553
      %v555 = vsel %vm548, %v554, 0.0
      %556 = vadd.xlane.f32.xlu0 %v555
      %v557 = vpop.xlane.xlu0 %556
      %v558 = vrcp.pop %v557
      %v559 = vmul.f32 %v554, %v558
      %560 = vrot.lane.b32.xlu0 %v509, 64
      %v561 = vpop.permute.xlu0 %560
      %v564 = vsel %vm548, %v559, 0
      %566 = vmatpush.msra.mxu0 0.0
      %567 = vmatpush.msra.mxu0 0.0
      %568 = vmatpush.msra.mxu0 0.0
      %569 = vmatpush.msra.mxu0 0.0
      %570 = vmatpush.msra.mxu0 0.0
      %571 = vmatpush.msra.mxu0 0.0
      %572 = vmatpush.msra.mxu0 0.0
      %573 = vmatpush.msra.mxu0 0.0
      %574 = vmatpush.msra.mxu0 0.0
      %575 = vmatpush.msra.mxu0 0.0
      %576 = vmatpush.msra.mxu0 0.0
      %577 = vmatpush.msra.mxu0 0.0
      %578 = vmatpush.msra.mxu0 0.0
      %579 = vmatpush.msra.mxu0 0.0
      %580 = vmatpush.msra.mxu0 0.0
      %581 = vmatpush.msra.mxu0 %v561
      %582 = vmatmul.f32.gmra.mxu0 %v564
      %v583 = vpop.f32.mrf.mxu0
      %v584 = vadd.f32 0.0, %v583
      %585 = vdwg.mxu0
      %586 = vrot.lane.b32.xlu0 %v509, 112
      %v587 = vpop.permute.xlu0 %586
      %588 = vrot.lane.b32.xlu0 %v509, 80
      %v589 = vpop.permute.xlu0 %588
      %v590 = vsel %vm518, %v587, 0
      %v592 = vsel %vm518, %v589, 0
      %594 = vmatpush.xpose.msra.mxu0 0.0
      %595 = vmatpush.xpose.msra.mxu0 0.0
      %596 = vmatpush.xpose.msra.mxu0 0.0
      %597 = vmatpush.xpose.msra.mxu0 0.0
      %598 = vmatpush.xpose.msra.mxu0 0.0
      %599 = vmatpush.xpose.msra.mxu0 0.0
      %600 = vmatpush.xpose.msra.mxu0 0.0
      %601 = vmatpush.xpose.msra.mxu0 0.0
      %602 = vmatpush.xpose.msra.mxu0 0.0
      %603 = vmatpush.xpose.msra.mxu0 0.0
      %604 = vmatpush.xpose.msra.mxu0 0.0
      %605 = vmatpush.xpose.msra.mxu0 0.0
      %606 = vmatpush.xpose.msra.mxu0 0.0
      %607 = vmatpush.xpose.msra.mxu0 0.0
      %608 = vmatpush.xpose.msra.mxu0 0.0
      %609 = vmatpush.xpose.msra.mxu0 %v592
      %610 = vmatmul.f32.gmra.mxu0 %v590
      %v611 = vpop.f32.mrf.mxu0
      %v612 = vadd.f32 0.0, %v611
      %613 = vdwg.mxu0
      %v614 = vmul.f32 %v612, 0.25
      %v615 = vadd.f32 %v614, %v545
      %v616 = vsel %vm548, %v615, -inf
      %617 = vmax.xlane.f32.xlu0 %v616
      %v618 = vpop.xlane.xlu0 %617
      %v619 = vsub.f32 %v615, %v618
      %v620 = vmul.f32 %v619, 1.442695
      %v621 = vpow.pop %v620
      %v622 = vsel %vm548, %v621, 0.0
      %623 = vadd.xlane.f32.xlu0 %v622
      %v624 = vpop.xlane.xlu0 %623
      %v625 = vrcp.pop %v624
      %v626 = vmul.f32 %v621, %v625
      %627 = vrot.lane.b32.xlu0 %v509, 48
      %v628 = vpop.permute.xlu0 %627
      %v631 = vsel %vm548, %v626, 0
      %633 = vmatpush.msra.mxu0 0.0
      %634 = vmatpush.msra.mxu0 0.0
      %635 = vmatpush.msra.mxu0 0.0
      %636 = vmatpush.msra.mxu0 0.0
      %637 = vmatpush.msra.mxu0 0.0
      %638 = vmatpush.msra.mxu0 0.0
      %639 = vmatpush.msra.mxu0 0.0
      %640 = vmatpush.msra.mxu0 0.0
      %641 = vmatpush.msra.mxu0 0.0
      %642 = vmatpush.msra.mxu0 0.0
      %643 = vmatpush.msra.mxu0 0.0
      %644 = vmatpush.msra.mxu0 0.0
      %645 = vmatpush.msra.mxu0 0.0
      %646 = vmatpush.msra.mxu0 0.0
      %647 = vmatpush.msra.mxu0 0.0
      %648 = vmatpush.msra.mxu0 %v628
      %649 = vmatmul.f32.gmra.mxu0 %v631
      %v650 = vpop.f32.mrf.mxu0
      %v651 = vadd.f32 0.0, %v650
      %652 = vdwg.mxu0
      %v654 = vsel %vm518, %v651, 0
      %656 = vmatpush.msra.mxu0 0.0
      %657 = vmatpush.msra.mxu0 0.0
      %658 = vmatpush.msra.mxu0 0.0
      %659 = vmatpush.msra.mxu0 0.0
      %660 = vmatpush.msra.mxu0 0.0
      %661 = vmatpush.msra.mxu0 0.0
      %662 = vmatpush.msra.mxu0 0.0
      %663 = vmatpush.msra.mxu0 0.0
      %664 = vmatpush.msra.mxu0 0.0
      %665 = vmatpush.msra.mxu0 0.0
      %666 = vmatpush.msra.mxu0 0.0
      %667 = vmatpush.msra.mxu0 0.0
      %668 = vmatpush.msra.mxu0 0.0
      %669 = vmatpush.msra.mxu0 0.0
      %670 = vmatpush.msra.mxu0 %v514
      %671 = vmatpush.msra.mxu0 %v513
      %672 = vmatmul.f32.gmra.mxu0 %v654
      %v673 = vpop.f32.mrf.mxu0
      %v674 = vadd.f32 0.0, %v673
      %675 = vdwg.mxu0
      %v677 = vsel %vm518, %v584, 0
      %679 = vmatpush.msra.mxu0 0.0
      %680 = vmatpush.msra.mxu0 0.0
      %681 = vmatpush.msra.mxu0 0.0
      %682 = vmatpush.msra.mxu0 0.0
      %683 = vmatpush.msra.mxu0 0.0
      %684 = vmatpush.msra.mxu0 0.0
      %685 = vmatpush.msra.mxu0 0.0
      %686 = vmatpush.msra.mxu0 0.0
      %687 = vmatpush.msra.mxu0 0.0
      %688 = vmatpush.msra.mxu0 0.0
      %689 = vmatpush.msra.mxu0 0.0
      %690 = vmatpush.msra.mxu0 0.0
      %691 = vmatpush.msra.mxu0 0.0
      %692 = vmatpush.msra.mxu0 0.0
      %693 = vmatpush.msra.mxu0 %v512
      %694 = vmatpush.msra.mxu0 %v511
      %695 = vmatmul.f32.gmra.mxu0 %v677
      %v696 = vpop.f32.mrf.mxu0
      %v697 = vadd.f32 %v674, %v696
      %698 = vdwg.mxu0
      %v699 = vld [vmem:[%s5] sm:$0x1]
      %v701 = vperm.slane %v699, 0
      %v703 = vadd.f32 %v697, %v701
      %v704 = vadd.f32 %v703, %v477
      %v705 = vld [vmem:[%s6] sm:$0x1]
      %v706 = vld [vmem:[%s7] sm:$0x1]
      %v707 = vsel %vm487, %v704, 0.0
      %708 = vadd.xlane.f32.xlu0 %v707
      %v709 = vpop.xlane.xlu0 %708
      %v710 = vrcp.pop 32.0
      %v711 = vmul.f32 32.0, %v710
      %v712 = vsub.f32 1.0, %v711
      %v713 = vmul.f32 %v710, %v712
      %v714 = vadd.f32 %v710, %v713
      %vm715 = vweird.f32 %v710
      %v716 = vsel %vm715, %v710, %v714
      %v717 = vmul.f32 %v709, %v716
      %v718 = vsub.f32 %v704, %v717
      %v719 = vmul.f32 %v718, %v718
      %v720 = vsel %vm487, %v719, 0.0
      %721 = vadd.xlane.f32.xlu0 %v720
      %v722 = vpop.xlane.xlu0 %721
      %v723 = vmul.f32 %v722, %v716
      %v724 = vadd.f32 %v723, 1e-12
      %v725 = vrsqrt.pop %v724
      %v726 = vmul.f32 %v725, %v724
      %v727 = vmul.f32 %v726, %v725
      %v728 = vmul.f32 0.5, %v727
      %v729 = vsub.f32 1.5, %v728
      %v730 = vmul.f32 %v725, %v729
      %vm731 = vweird.f32 %v724
      %vm732 = vweird.f32 %v725
      %vm733 = vmor %vm731, %vm732
      %v734 = vsel %vm733, %v725, %v730
      %v735 = vmul.f32 %v718, %v734
      %v737 = vperm.slane %v705, 0
      %v739 = vmul.f32 %v735, %v737
      %v741 = vperm.slane %v706, 0
      %v743 = vadd.f32 %v739, %v741
      %v744 = vld [vmem:[%s8] sm:$0xff]
      %v745 = vld [vmem:[%s8 + $0x8] sm:$0xff]
      %v746 = vld [vmem:[%s8 + $0x10] sm:$0xff]
      %v747 = vld [vmem:[%s8 + $0x18] sm:$0xff]
      %v748 = vld [vmem:[%s9] sm:$0x1]
      %v750 = vperm.slane %v748, 0
      %v753 = vsel %vm487, %v743, 0
      %755 = vmatpush.msra.mxu0 0.0
      %756 = vmatpush.msra.mxu0 0.0
      %757 = vmatpush.msra.mxu0 0.0
      %758 = vmatpush.msra.mxu0 0.0
      %759 = vmatpush.msra.mxu0 0.0
      %760 = vmatpush.msra.mxu0 0.0
      %761 = vmatpush.msra.mxu0 0.0
      %762 = vmatpush.msra.mxu0 0.0
      %763 = vmatpush.msra.mxu0 0.0
      %764 = vmatpush.msra.mxu0 0.0
      %765 = vmatpush.msra.mxu0 0.0
      %766 = vmatpush.msra.mxu0 0.0
      %767 = vmatpush.msra.mxu0 %v747
      %768 = vmatpush.msra.mxu0 %v746
      %769 = vmatpush.msra.mxu0 %v745
      %770 = vmatpush.msra.mxu0 %v744
      %771 = vmatmul.f32.gmra.mxu0 %v753
      %v772 = vpop.f32.mrf.mxu0
      %v773 = vadd.f32 %v750, %v772
      %774 = vdwg.mxu0
      %v775 = vmul.f32 %v773, 0.5
      %v776 = vrcp.pop 1.4142135
      %v777 = vmul.f32 1.4142135, %v776
      %v778 = vsub.f32 1.0, %v777
      %v779 = vmul.f32 %v776, %v778
      %v780 = vadd.f32 %v776, %v779
      %vm781 = vweird.f32 %v776
      %v782 = vsel %vm781, %v776, %v780
      %v783 = vmul.f32 %v773, %v782
      %v784 = vmul.f32 %v783, %v783
      %v785 = vmin.f32 16.0, %v784
      %v786 = vmul.f32 %v785, 2.1237322e-06
      %v787 = vadd.f32 %v786, 0.00028619796
      %v788 = vmul.f32 %v785, %v787
      %v789 = vadd.f32 %v788, 0.0036580483
      %v790 = vmul.f32 %v785, %v789
      %v791 = vadd.f32 %v790, 0.05243302
      %v792 = vmul.f32 %v785, %v791
      %v793 = vadd.f32 %v792, 0.18741608
      %v794 = vmul.f32 %v785, %v793
      %v795 = vadd.f32 %v794, 1.1283791
      %v796 = vmul.f32 %v783, %v795
      %v797 = vmul.f32 %v785, 3.8918573e-05
      %v798 = vadd.f32 %v797, 0.001143296
      %v799 = vmul.f32 %v785, %v798
      %v800 = vadd.f32 %v799, 0.014752088
      %v801 = vmul.f32 %v785, %v800
      %v802 = vadd.f32 %v801, 0.112945676
      %v803 = vmul.f32 %v785, %v802
      %v804 = vadd.f32 %v803, 0.4994258
      %v805 = vmul.f32 %v785, %v804
      %v806 = vadd.f32 %v805, 1.0
      %v807 = vrcp.pop %v806
      %v808 = vmul.f32 %v806, %v807
      %v809 = vsub.f32 1.0, %v808
      %v810 = vmul.f32 %v807, %v809
      %v811 = vadd.f32 %v807, %v810
      %vm812 = vweird.f32 %v806
      %vm813 = vweird.f32 %v807
      %vm814 = vmor %vm812, %vm813
      %v815 = vsel %vm814, %v807, %v811
      %v816 = vand.u32 2147483647, %v806
      %vm817 = vcmp.eq.f32.partialorder %v816, 8.507059e+37
      %v818 = vand.u32 %v806, 2147483648
      %v819 = vor.u32 1.1754944e-38, %v818
      %v820 = vsel %vm817, %v819, %v815
      %v821 = vmul.f32 %v796, %v820
      %v822 = vmin.f32 %v821, 1.0
      %v823 = vmax.f32 %v822, -1.0
      %v824 = vadd.f32 %v823, 1.0
      %v825 = vmul.f32 %v775, %v824
      %v826 = vld [vmem:[%s10] sm:$0xff]
      %v827 = vld [vmem:[%s10 + $0x8] sm:$0xff]
      %v828 = vld [vmem:[%s10 + $0x10] sm:$0xff]
      %v829 = vld [vmem:[%s10 + $0x18] sm:$0xff]
      %v830 = vld [vmem:[%s10 + $0x20] sm:$0xff]
      %v831 = vld [vmem:[%s10 + $0x28] sm:$0xff]
      %v832 = vld [vmem:[%s10 + $0x30] sm:$0xff]
      %v833 = vld [vmem:[%s10 + $0x38] sm:$0xff]
      %v834 = vld [vmem:[%s11] sm:$0x1]
      %v836 = vperm.slane %v834, 0
      %vm838 = vcmask 523264
      %v840 = vsel %vm838, %v825, 0
      %842 = vmatpush.msra.mxu0 0.0
      %843 = vmatpush.msra.mxu0 0.0
      %844 = vmatpush.msra.mxu0 0.0
      %845 = vmatpush.msra.mxu0 0.0
      %846 = vmatpush.msra.mxu0 0.0
      %847 = vmatpush.msra.mxu0 0.0
      %848 = vmatpush.msra.mxu0 0.0
      %849 = vmatpush.msra.mxu0 0.0
      %850 = vmatpush.msra.mxu0 %v833
      %851 = vmatpush.msra.mxu0 %v832
      %852 = vmatpush.msra.mxu0 %v831
      %853 = vmatpush.msra.mxu0 %v830
      %854 = vmatpush.msra.mxu0 %v829
      %855 = vmatpush.msra.mxu0 %v828
      %856 = vmatpush.msra.mxu0 %v827
      %857 = vmatpush.msra.mxu0 %v826
      %858 = vmatmul.f32.gmra.mxu0 %v840
      %v859 = vpop.f32.mrf.mxu0
      %v860 = vadd.f32 %v836, %v859
      %861 = vdwg.mxu0
      %v862 = vadd.f32 %v860, %v743
      %v863 = vld [vmem:[%s12] sm:$0x1]
      %v864 = vld [vmem:[%s13] sm:$0x1]
      %v865 = vsel %vm487, %v862, 0.0
      %866 = vadd.xlane.f32.xlu0 %v865
      %v867 = vpop.xlane.xlu0 %866
      %v868 = vmul.f32 %v867, %v716
      %v869 = vsub.f32 %v862, %v868
      %v870 = vmul.f32 %v869, %v869
      %v871 = vsel %vm487, %v870, 0.0
      %872 = vadd.xlane.f32.xlu0 %v871
      %v873 = vpop.xlane.xlu0 %872
      %v874 = vmul.f32 %v873, %v716
      %v875 = vadd.f32 %v874, 1e-12
      %v876 = vrsqrt.pop %v875
      %v877 = vmul.f32 %v876, %v875
      %v878 = vmul.f32 %v877, %v876
      %v879 = vmul.f32 0.5, %v878
      %v880 = vsub.f32 1.5, %v879
      %v881 = vmul.f32 %v876, %v880
      %vm882 = vweird.f32 %v875
      %vm883 = vweird.f32 %v876
      %vm884 = vmor %vm882, %vm883
      %v885 = vsel %vm884, %v876, %v881
      %v886 = vmul.f32 %v869, %v885
      %v888 = vperm.slane %v863, 0
      %v890 = vmul.f32 %v886, %v888
      %v892 = vperm.slane %v864, 0
      %v894 = vadd.f32 %v890, %v892
      %895 = vst.msk [vmem:[%s476] sm:$0xff] %vm487, %v894
      %p896 = scmp.lt.s32.totalorder %s25, 1
      %s897 = scalar_select %p896, %s25, 1
      %s898 = smul.addr %s897, 8
      %s899 = scalar_lea.vmem %s14, %s898
      // Predicated region
      $region77: #{bert_classifier_forward.5} parent=75 // pred_check
        %p900 = pneg %p347
      $region78: #{bert_classifier_forward.5} parent=75 // pred_check_branch
        %902 = sbr.rel (%p900) target = $region80
      $region79: #{bert_classifier_forward.5} parent=75 // pred_region
        _
      $region80: #{bert_classifier_forward.5} parent=75 // pred_fallthru
        _
    $region76: #{bert_classifier_forward.5} parent=5 // pred_fallthru
      _
    %p903 = scmp.le.s32.totalorder 2, %s20
    // Predicated region
    $region81: #{bert_classifier_forward.5} parent=5 // pred_check
      %p904 = pneg %p903
    $region82: #{bert_classifier_forward.5} parent=5 // pred_check_branch
      %906 = sbr.rel (%p904) target = $region84
    $region83: #{bert_classifier_forward.5} parent=5 // pred_region
      %s907 = ssub.s32 %s20, 2
      // Predicated region
      $region85: #{bert_classifier_forward.5} parent=83 // pred_check
        %p908 = pneg %p353
      $region86: #{bert_classifier_forward.5} parent=83 // pred_check_branch
        %910 = sbr.rel (%p908) target = $region88
      $region87: #{bert_classifier_forward.5} parent=83 // pred_region
        %p911 = scmp.lt.s32.totalorder %s26, 1
        %s912 = scalar_select %p911, %s26, 1
        %s913 = smul.addr %s912, 8
        %s914 = scalar_lea.vmem %s14, %s913
      $region88: #{bert_classifier_forward.5} parent=83 // pred_fallthru
        _
    $region84: #{bert_classifier_forward.5} parent=5 // pred_fallthru
      _
  $region6: #{bert_classifier_forward.5} parent=0 // loop_footer
    %s24 = sadd.s32 1, %s20
  $region7: #{bert_classifier_forward.5} parent=0 // loop_footer_branch
    %19 = sbr.rel target = $region3
  $region8: #{bert_classifier_forward.5} parent=0 // loop_exit
    _

</llo_original>
